<compile_context>
chip_gen: v5e
topology: v5e:2x2
jax: 0.10.0
libtpu: 0.0.40
codegen_flags: <defaults>
</compile_context>

<pallas_src>
import jax
import jax.numpy as jnp
from jax import lax
from jax.experimental import pallas as pl
from jax.experimental.pallas import tpu as pltpu

NUM_ACT = 8      # num_act (includes padding / SOC / EOC / unknown)
HIDDEN = 32      # LSTM hidden size
PREFIX_LEN = 6
SUFFIX_LEN = 5
BATCH = 4


# ---------------------------------------------------------------------------
# packed-weight layouts (row offsets, shared by host packer and kernel)
# ---------------------------------------------------------------------------
def _align8(n):
    return ((n + 7) // 8) * 8


def _packA_layout(C, H):
    """Pack A, width 4H (=128): encoder LSTM weights + fused 128-lane FC head."""
    o_ewih = 0                       # (C, 4H)   encoder input -> gates
    o_ewhh = _align8(C)              # (H, 4H)   encoder hidden -> gates
    o_eb = o_ewhh + H                # (1, 4H)   encoder gate bias
    o_fcw = _align8(o_eb + 1)        # (2H, 4H)  fused FC weight (lanes 0:NA act, NA time)
    o_fcb = o_fcw + 2 * H            # (1, 4H)   fused FC bias
    rows = _align8(o_fcb + 1)
    return o_ewih, o_ewhh, o_eb, o_fcw, o_fcb, rows


def _packB_layout(NA, H):
    """Pack B, width 8H (=256): fused block-diagonal decoder gate weights."""
    o_wh = 0                         # (2H, 8H)  [h_act | h_time] -> gates
    o_wxa = 2 * H                    # (NA, 8H)  activity one-hot -> gates
    o_wxt = _align8(o_wxa + NA)      # (1, 8H)   time scalar      -> gates
    o_b = _align8(o_wxt + 1)         # (1, 8H)   gate bias
    rows = _align8(o_b + 1)
    return o_wh, o_wxa, o_wxt, o_b, rows


# ---------------------------------------------------------------------------
# kernel
# ---------------------------------------------------------------------------
def _seq2seq_kernel(prefix_ref, act_lbl_ref, time_sfx_ref, flags_ref,
                    packA_ref, packB_ref, out_ref):
    B, P, C = prefix_ref.shape           # (B, P, num_act+2), batch-major
    S = out_ref.shape[1]                 # suffix length
    OW = out_ref.shape[2]                # fused output lane width (>= NA+1)
    H = packA_ref.shape[1] // 4          # hidden size
    NA = C - 2                           # num_act
    H2 = 2 * H
    f32 = jnp.float32

    # ---------------- unpack weights (static, 8-row-aligned slices) ----------
    oA_wih, oA_whh, oA_b, oA_fcw, oA_fcb, _ = _packA_layout(C, H)
    enc_wih = packA_ref[oA_wih:oA_wih + C, :]                        # (C, 4H)
    enc_whh = packA_ref[oA_whh:oA_whh + H, :]                        # (H, 4H)
    enc_b = jnp.broadcast_to(packA_ref[oA_b:oA_b + 1, :], (B, 4 * H))
    fc_w = packA_ref[oA_fcw:oA_fcw + H2, :]                          # (2H, 128)
    fc_b = jnp.broadcast_to(packA_ref[oA_fcb:oA_fcb + 1, :], (B, 4 * H))

    oB_wh, oB_wxa, oB_wxt, oB_b, _ = _packB_layout(NA, H)
    w_h = packB_ref[oB_wh:oB_wh + H2, :]                             # (2H, 8H)
    w_xa = packB_ref[oB_wxa:oB_wxa + NA, :]                          # (NA, 8H)
    w_xt = jnp.broadcast_to(packB_ref[oB_wxt:oB_wxt + 1, :], (B, 8 * H))
    dec_b = jnp.broadcast_to(packB_ref[oB_b:oB_b + 1, :], (B, 8 * H))

    # ================= encoder (fully unrolled, P steps) =====================
    # input projections hoisted off the h/c dependence chain
    # (kept per-step instead of one batched matmul: see TODO(synk) at top)
    xp = [jnp.dot(prefix_ref[:, t, :], enc_wih, preferred_element_type=f32) + enc_b
          for t in range(P)]                                         # P x (B, 4H)

    h = jnp.zeros((B, H), f32)
    c = jnp.zeros((B, H), f32)
    for t in range(P):
        g = xp[t] + jnp.dot(h, enc_whh, preferred_element_type=f32)  # [i f g o]
        s = jax.nn.sigmoid(g)                                        # 1 vreg
        tg = jnp.tanh(g[:, 2 * H:3 * H])                             # g gate only
        c = s[:, H:2 * H] * c + s[:, 0:H] * tg
        h = s[:, 3 * H:4 * H] * jnp.tanh(c)

    last = prefix_ref[:, P - 1, :]                                   # (B, C)

    # ===== fused activity + time decoders (fully unrolled, S steps) ==========
    # combined state layout: [activity | time]; gate lane order
    # [i_a i_t | f_a f_t | o_a o_t | g_a g_t], 256 lanes total.
    h2 = jnp.concatenate([h, h], axis=1)                             # (B, 2H)
    c2 = jnp.concatenate([c, c], axis=1)                             # (B, 2H)
    x_act = last[:, 0:NA]                                            # (B, NA)
    x_time = last[:, C - 1:C]                                        # (B, 1)

    lane_iota = lax.broadcasted_iota(jnp.int32, (B, NA), 1)

    for t in range(S):
        # split gates matmul (no per-step lane concat of [h2 | x]):
        gates = (jnp.dot(h2, w_h, preferred_element_type=f32)
                 + jnp.dot(x_act, w_xa, preferred_element_type=f32)
                 + x_time * w_xt
                 + dec_b)                                            # (B, 8H)
        sg = jax.nn.sigmoid(gates[:, 0:3 * H2])                      # i, f, o lanes
        gg = jnp.tanh(gates[:, 3 * H2:4 * H2])                       # g lanes
        c2 = sg[:, H2:2 * H2] * c2 + sg[:, 0:H2] * gg
        h2 = sg[:, 2 * H2:3 * H2] * jnp.tanh(c2)

        # fused 128-lane FC head: lanes 0:NA = act logits, lane NA = time pred
        pred = jnp.dot(h2, fc_w, preferred_element_type=f32) + fc_b  # (B, 128)
        out_ref[:, t, :] = pred[:, 0:OW]                             # one store/step

        act_logits = pred[:, 0:NA]                                   # (B, NA)
        time_pred = pred[:, NA:NA + 1]                               # (B, 1)

        # argmax -> one-hot (class 0 zeroed) with a SINGLE cross-lane max:
        # sortable int32 key; lane index (first-occurrence tie-break) in the 3
        # low bits (only perturbs ordering of logits within ~7 ULP).
        bits = pltpu.bitcast(act_logits, jnp.int32)
        okey = bits ^ ((bits >> 31) & jnp.int32(0x7FFFFFFF))         # order-preserving
        okey = (okey & jnp.int32(-8)) | (jnp.int32(NA - 1) - lane_iota)
        kmax = jnp.max(okey, axis=1, keepdims=True)
        best = ((okey == kmax) & (lane_iota != 0)).astype(f32)       # (B, NA)

        # teacher one-hot built in-kernel from int32 labels (class 0 zeroed)
        teacher = ((act_lbl_ref[:, t:t + 1] == lane_iota)
                   & (lane_iota != 0)).astype(f32)                   # (B, NA)

        x_act = jnp.where(flags_ref[t] > 0, teacher, best)
        x_time = jnp.where(flags_ref[S + t] > 0, time_sfx_ref[:, t:t + 1], time_pred)


# ---------------------------------------------------------------------------
# parameters
# ---------------------------------------------------------------------------
def init_params(key, num_act, hidden):
    """Deterministic LSTM/Linear weights, uniform(-1/sqrt(H), 1/sqrt(H))."""
    in_enc = num_act + 2
    bound = 1.0 / float(jnp.sqrt(jnp.float32(hidden)))
    keys = jax.random.split(key, 13)

    def u(kk, shape):
        return jax.random.uniform(kk, shape, jnp.float32, -bound, bound)

    return {
        # encoder LSTM (weights stored pre-transposed: x @ W_ih^T == x @ wih_t)
        "enc_wih_t": u(keys[0], (in_enc, 4 * hidden)),
        "enc_whh_t": u(keys[1], (hidden, 4 * hidden)),
        "enc_b":     u(keys[2], (1, 4 * hidden)),
        # activity decoder LSTM + fc
        "adec_wih_t": u(keys[3], (num_act, 4 * hidden)),
        "adec_whh_t": u(keys[4], (hidden, 4 * hidden)),
        "adec_b":     u(keys[5], (1, 4 * hidden)),
        "adec_fcw_t": u(keys[6], (hidden, num_act)),
        "adec_fcb":   u(keys[7], (1, num_act)),
        # time decoder LSTM + fc
        "tdec_wih_t": u(keys[8], (1, 4 * hidden)),
        "tdec_whh_t": u(keys[9], (hidden, 4 * hidden)),
        "tdec_b":     u(keys[10], (1, 4 * hidden)),
        "tdec_fcw_t": u(keys[11], (hidden, 1)),
        "tdec_fcb":   u(keys[12], (1, 1)),
    }


def pack_params(params, num_act, hidden):
    """Pack the 13 weight tensors into 2 arrays.  Runs ONCE at init (hoisted
    out of the per-call path)."""
    NA, H = num_act, hidden
    C = NA + 2
    assert H % 8 == 0, "hidden size must be a multiple of 8"

    # ---- pack A: (rows, 4H) -- encoder weights + trimmed 128-lane FC head ----
    oA_wih, oA_whh, oA_b, oA_fcw, oA_fcb, rowsA = _packA_layout(C, H)
    fc_w = jnp.zeros((2 * H, 4 * H), jnp.float32)
    fc_w = fc_w.at[0:H, 0:NA].set(params["adec_fcw_t"])
    fc_w = fc_w.at[H:2 * H, NA:NA + 1].set(params["tdec_fcw_t"])
    fc_b = jnp.zeros((1, 4 * H), jnp.float32)
    fc_b = fc_b.at[:, 0:NA].set(params["adec_fcb"])
    fc_b = fc_b.at[:, NA:NA + 1].set(params["tdec_fcb"])

    packA = jnp.zeros((rowsA, 4 * H), jnp.float32)
    packA = packA.at[oA_wih:oA_wih + C].set(params["enc_wih_t"])
    packA = packA.at[oA_whh:oA_whh + H].set(params["enc_whh_t"])
    packA = packA.at[oA_b:oA_b + 1].set(params["enc_b"])
    packA = packA.at[oA_fcw:oA_fcw + 2 * H].set(fc_w)
    packA = packA.at[oA_fcb:oA_fcb + 1].set(fc_b)

    # ---- pack B: (rows, 8H) -- block-diag fused decoder gate weights --------
    # fused gate lane order: [i_a i_t | f_a f_t | o_a o_t | g_a g_t]
    GATE_ORDER = (0, 1, 3, 2)   # param columns are [i f g o] -> fused [i f o g]

    def interleave_cols(wa, wt):
        ra, rt = wa.shape[0], wt.shape[0]
        blocks = []
        for g in GATE_ORDER:
            top = jnp.concatenate(
                [wa[:, g * H:(g + 1) * H], jnp.zeros((ra, H), jnp.float32)], axis=1)
            bot = jnp.concatenate(
                [jnp.zeros((rt, H), jnp.float32), wt[:, g * H:(g + 1) * H]], axis=1)
            blocks.append(jnp.concatenate([top, bot], axis=0))
        return jnp.concatenate(blocks, axis=1)           # (ra+rt, 8H)

    def interleave_bias(ba, bt):
        parts = []
        for g in GATE_ORDER:
            parts.append(ba[:, g * H:(g + 1) * H])
            parts.append(bt[:, g * H:(g + 1) * H])
        return jnp.concatenate(parts, axis=1)            # (1, 8H)

    dec_wh = interleave_cols(params["adec_whh_t"], params["tdec_whh_t"])  # (2H, 8H)
    dec_wx = interleave_cols(params["adec_wih_t"], params["tdec_wih_t"])  # (NA+1, 8H)
    dec_b = interleave_bias(params["adec_b"], params["tdec_b"])           # (1, 8H)
    w_xa = dec_wx[0:NA, :]
    w_xt = dec_wx[NA:NA + 1, :]

    oB_wh, oB_wxa, oB_wxt, oB_b, rowsB = _packB_layout(NA, H)
    packB = jnp.zeros((rowsB, 8 * H), jnp.float32)
    packB = packB.at[oB_wh:oB_wh + 2 * H].set(dec_wh)
    packB = packB.at[oB_wxa:oB_wxa + NA].set(w_xa)
    packB = packB.at[oB_wxt:oB_wxt + 1].set(w_xt)
    packB = packB.at[oB_b:oB_b + 1].set(dec_b)
    return packA, packB


# ---------------------------------------------------------------------------
# forward wrapper
# ---------------------------------------------------------------------------
@jax.jit
def seq2seq_trace_forward(trace_prefix, act_suffix, time_suffix,
                          teacher_force_ratio, packA, packB, rng_key):
    """Mirrors Seq2Seq_trace.forward.

    trace_prefix: (B, P, num_act+2) float32   (batch-major, no transposes)
    act_suffix:   (B, S) int32 labels
    time_suffix:  (B, S) float32
    returns: act_predictions (B, S, num_act), time_predictions (B, S, 1)
    """
    B, P, C = trace_prefix.shape
    NA = C - 2
    S = act_suffix.shape[1]
    OW = _align8(NA + 1)                 # fused output lane width
    assert NA <= 8, "argmax key packs the lane index into 3 bits (num_act <= 8)"

    # deterministic replacement for random.random() < teacher_force_ratio:
    # 2S i.i.d. coins; first S -> activity decoder, next S -> time decoder
    flags = (jax.random.uniform(rng_key, (2 * S,))
             < teacher_force_ratio).astype(jnp.int32)

    vmem = pl.BlockSpec(memory_space=pltpu.MemorySpace.VMEM)
    smem = pl.BlockSpec(memory_space=pltpu.MemorySpace.SMEM)

    fused = pl.pallas_call(
        _seq2seq_kernel,
        out_shape=jax.ShapeDtypeStruct((B, S, OW), jnp.float32),
        in_specs=[vmem, vmem, vmem, smem, vmem, vmem],
        out_specs=vmem,
    )(trace_prefix.astype(jnp.float32), act_suffix.astype(jnp.int32),
      time_suffix.astype(jnp.float32), flags, packA, packB)

    act_predictions = fused[:, :, 0:NA]           # (B, S, num_act)
    time_predictions = fused[:, :, NA:NA + 1]     # (B, S, 1)
    return act_predictions, time_predictions


if __name__ == "__main__":
    key = jax.random.PRNGKey(0)
    kp, kx, ka, kt, kf = jax.random.split(key, 5)

    params = init_params(kp, NUM_ACT, HIDDEN)
    # packed ONCE at init, outside the per-call jitted path
    packA, packB = pack_params(params, NUM_ACT, HIDDEN)

    trace_prefix = jax.random.uniform(kx, (BATCH, PREFIX_LEN, NUM_ACT + 2),
                                      jnp.float32)
    act_suffix = jax.random.randint(ka, (BATCH, SUFFIX_LEN), 0, NUM_ACT,
                                    dtype=jnp.int32)
    time_suffix = jax.random.uniform(kt, (BATCH, SUFFIX_LEN), jnp.float32)

    act_pred, time_pred = seq2seq_trace_forward(
        trace_prefix, act_suffix, time_suffix, 0.5, packA, packB, kf)
    jax.block_until_ready((act_pred, time_pred))

    assert act_pred.shape == (BATCH, SUFFIX_LEN, NUM_ACT)
    assert time_pred.shape == (BATCH, SUFFIX_LEN, 1)
    assert act_pred.dtype == jnp.float32 and time_pred.dtype == jnp.float32
    print("KERNEL_OK")
</pallas_src>

<mosaic_0001>
module attributes {stable_mosaic.version = 11 : i64} {
  func.func @_seq2seq_kernel(%arg0: memref<4x6x10xf32, #tpu.memory_space<vmem>>, %arg1: memref<4x5xi32, #tpu.memory_space<vmem>>, %arg2: memref<4x5xf32, #tpu.memory_space<vmem>>, %arg3: memref<10xi32, #tpu.memory_space<smem>>, %arg4: memref<128x128xf32, #tpu.memory_space<vmem>>, %arg5: memref<88x256xf32, #tpu.memory_space<vmem>>, %arg6: memref<4x5x16xf32, #tpu.memory_space<vmem>>) attributes {dimension_semantics = [], scalar_prefetch = 0 : i64, scratch_operands = 0 : i64, tpu.core_type = #tpu.core_type<tc>} {
    %c0 = arith.constant 0 : index
    %c0_0 = arith.constant 0 : index
    %0 = vector.load %arg4[%c0, %c0_0] : memref<128x128xf32, #tpu.memory_space<vmem>>, vector<10x128xf32>
    %c16 = arith.constant 16 : index
    %c0_1 = arith.constant 0 : index
    %1 = vector.load %arg4[%c16, %c0_1] : memref<128x128xf32, #tpu.memory_space<vmem>>, vector<32x128xf32>
    %c48 = arith.constant 48 : index
    %c0_2 = arith.constant 0 : index
    %2 = vector.load %arg4[%c48, %c0_2] : memref<128x128xf32, #tpu.memory_space<vmem>>, vector<1x128xf32>
    %3 = vector.shape_cast %2 : vector<1x128xf32> to vector<1x128xf32>
    %4 = vector.broadcast %3 : vector<1x128xf32> to vector<4x128xf32>
    %c56 = arith.constant 56 : index
    %c0_3 = arith.constant 0 : index
    %5 = vector.load %arg4[%c56, %c0_3] : memref<128x128xf32, #tpu.memory_space<vmem>>, vector<64x128xf32>
    %c120 = arith.constant 120 : index
    %c0_4 = arith.constant 0 : index
    %6 = vector.load %arg4[%c120, %c0_4] : memref<128x128xf32, #tpu.memory_space<vmem>>, vector<1x128xf32>
    %7 = vector.shape_cast %6 : vector<1x128xf32> to vector<1x128xf32>
    %8 = vector.broadcast %7 : vector<1x128xf32> to vector<4x128xf32>
    %c0_5 = arith.constant 0 : index
    %c0_6 = arith.constant 0 : index
    %9 = vector.load %arg5[%c0_5, %c0_6] : memref<88x256xf32, #tpu.memory_space<vmem>>, vector<64x256xf32>
    %c64 = arith.constant 64 : index
    %c0_7 = arith.constant 0 : index
    %10 = vector.load %arg5[%c64, %c0_7] : memref<88x256xf32, #tpu.memory_space<vmem>>, vector<8x256xf32>
    %c72 = arith.constant 72 : index
    %c0_8 = arith.constant 0 : index
    %11 = vector.load %arg5[%c72, %c0_8] : memref<88x256xf32, #tpu.memory_space<vmem>>, vector<1x256xf32>
    %12 = vector.shape_cast %11 : vector<1x256xf32> to vector<1x256xf32>
    %13 = vector.broadcast %12 : vector<1x256xf32> to vector<4x256xf32>
    %c80 = arith.constant 80 : index
    %c0_9 = arith.constant 0 : index
    %14 = vector.load %arg5[%c80, %c0_9] : memref<88x256xf32, #tpu.memory_space<vmem>>, vector<1x256xf32>
    %15 = vector.shape_cast %14 : vector<1x256xf32> to vector<1x256xf32>
    %16 = vector.broadcast %15 : vector<1x256xf32> to vector<4x256xf32>
    %c0_10 = arith.constant 0 : index
    %c0_11 = arith.constant 0 : index
    %c0_12 = arith.constant 0 : index
    %17 = vector.load %arg0[%c0_10, %c0_11, %c0_12] : memref<4x6x10xf32, #tpu.memory_space<vmem>>, vector<4x1x10xf32>
    %18 = vector.shape_cast %17 : vector<4x1x10xf32> to vector<4x10xf32>
    %cst = arith.constant dense<0.000000e+00> : vector<4x128xf32>
    %19 = tpu.matmul %18, %0, %cst {dimension_numbers = #tpu.dot_dimension_numbers<[1], [0], [0], [1], [0, 0, 1, 1], [], []>} : vector<4x10xf32>, vector<10x128xf32>, vector<4x128xf32> -> vector<4x128xf32>
    %20 = arith.addf %19, %4 : vector<4x128xf32>
    %c0_13 = arith.constant 0 : index
    %c1 = arith.constant 1 : index
    %c0_14 = arith.constant 0 : index
    %21 = vector.load %arg0[%c0_13, %c1, %c0_14] : memref<4x6x10xf32, #tpu.memory_space<vmem>>, vector<4x1x10xf32>
    %22 = vector.shape_cast %21 : vector<4x1x10xf32> to vector<4x10xf32>
    %cst_15 = arith.constant dense<0.000000e+00> : vector<4x128xf32>
    %23 = tpu.matmul %22, %0, %cst_15 {dimension_numbers = #tpu.dot_dimension_numbers<[1], [0], [0], [1], [0, 0, 1, 1], [], []>} : vector<4x10xf32>, vector<10x128xf32>, vector<4x128xf32> -> vector<4x128xf32>
    %24 = arith.addf %23, %4 : vector<4x128xf32>
    %c0_16 = arith.constant 0 : index
    %c2 = arith.constant 2 : index
    %c0_17 = arith.constant 0 : index
    %25 = vector.load %arg0[%c0_16, %c2, %c0_17] : memref<4x6x10xf32, #tpu.memory_space<vmem>>, vector<4x1x10xf32>
    %26 = vector.shape_cast %25 : vector<4x1x10xf32> to vector<4x10xf32>
    %cst_18 = arith.constant dense<0.000000e+00> : vector<4x128xf32>
    %27 = tpu.matmul %26, %0, %cst_18 {dimension_numbers = #tpu.dot_dimension_numbers<[1], [0], [0], [1], [0, 0, 1, 1], [], []>} : vector<4x10xf32>, vector<10x128xf32>, vector<4x128xf32> -> vector<4x128xf32>
    %28 = arith.addf %27, %4 : vector<4x128xf32>
    %c0_19 = arith.constant 0 : index
    %c3 = arith.constant 3 : index
    %c0_20 = arith.constant 0 : index
    %29 = vector.load %arg0[%c0_19, %c3, %c0_20] : memref<4x6x10xf32, #tpu.memory_space<vmem>>, vector<4x1x10xf32>
    %30 = vector.shape_cast %29 : vector<4x1x10xf32> to vector<4x10xf32>
    %cst_21 = arith.constant dense<0.000000e+00> : vector<4x128xf32>
    %31 = tpu.matmul %30, %0, %cst_21 {dimension_numbers = #tpu.dot_dimension_numbers<[1], [0], [0], [1], [0, 0, 1, 1], [], []>} : vector<4x10xf32>, vector<10x128xf32>, vector<4x128xf32> -> vector<4x128xf32>
    %32 = arith.addf %31, %4 : vector<4x128xf32>
    %c0_22 = arith.constant 0 : index
    %c4 = arith.constant 4 : index
    %c0_23 = arith.constant 0 : index
    %33 = vector.load %arg0[%c0_22, %c4, %c0_23] : memref<4x6x10xf32, #tpu.memory_space<vmem>>, vector<4x1x10xf32>
    %34 = vector.shape_cast %33 : vector<4x1x10xf32> to vector<4x10xf32>
    %cst_24 = arith.constant dense<0.000000e+00> : vector<4x128xf32>
    %35 = tpu.matmul %34, %0, %cst_24 {dimension_numbers = #tpu.dot_dimension_numbers<[1], [0], [0], [1], [0, 0, 1, 1], [], []>} : vector<4x10xf32>, vector<10x128xf32>, vector<4x128xf32> -> vector<4x128xf32>
    %36 = arith.addf %35, %4 : vector<4x128xf32>
    %c0_25 = arith.constant 0 : index
    %c5 = arith.constant 5 : index
    %c0_26 = arith.constant 0 : index
    %37 = vector.load %arg0[%c0_25, %c5, %c0_26] : memref<4x6x10xf32, #tpu.memory_space<vmem>>, vector<4x1x10xf32>
    %38 = vector.shape_cast %37 : vector<4x1x10xf32> to vector<4x10xf32>
    %cst_27 = arith.constant dense<0.000000e+00> : vector<4x128xf32>
    %39 = tpu.matmul %38, %0, %cst_27 {dimension_numbers = #tpu.dot_dimension_numbers<[1], [0], [0], [1], [0, 0, 1, 1], [], []>} : vector<4x10xf32>, vector<10x128xf32>, vector<4x128xf32> -> vector<4x128xf32>
    %40 = arith.addf %39, %4 : vector<4x128xf32>
    %cst_28 = arith.constant 0.000000e+00 : f32
    %41 = vector.broadcast %cst_28 : f32 to vector<4x32xf32>
    %cst_29 = arith.constant 0.000000e+00 : f32
    %42 = vector.broadcast %cst_29 : f32 to vector<4x32xf32>
    %cst_30 = arith.constant dense<0.000000e+00> : vector<4x128xf32>
    %43 = tpu.matmul %41, %1, %cst_30 {dimension_numbers = #tpu.dot_dimension_numbers<[1], [0], [0], [1], [0, 0, 1, 1], [], []>} : vector<4x32xf32>, vector<32x128xf32>, vector<4x128xf32> -> vector<4x128xf32>
    %44 = arith.addf %20, %43 : vector<4x128xf32>
    %45 = arith.negf %44 : vector<4x128xf32>
    %46 = math.exp %45 : vector<4x128xf32>
    %cst_31 = arith.constant 1.000000e+00 : f32
    %47 = vector.broadcast %cst_31 : f32 to vector<4x128xf32>
    %48 = arith.addf %47, %46 : vector<4x128xf32>
    %49 = arith.divf %47, %48 : vector<4x128xf32>
    %50 = vector.extract_strided_slice %44 {offsets = [0, 64], sizes = [4, 32], strides = [1, 1]} : vector<4x128xf32> to vector<4x32xf32>
    %51 = math.tanh %50 : vector<4x32xf32>
    %52 = vector.extract_strided_slice %49 {offsets = [0, 32], sizes = [4, 32], strides = [1, 1]} : vector<4x128xf32> to vector<4x32xf32>
    %53 = arith.mulf %52, %42 : vector<4x32xf32>
    %54 = vector.extract_strided_slice %49 {offsets = [0, 0], sizes = [4, 32], strides = [1, 1]} : vector<4x128xf32> to vector<4x32xf32>
    %55 = arith.mulf %54, %51 : vector<4x32xf32>
    %56 = arith.addf %53, %55 : vector<4x32xf32>
    %57 = vector.extract_strided_slice %49 {offsets = [0, 96], sizes = [4, 32], strides = [1, 1]} : vector<4x128xf32> to vector<4x32xf32>
    %58 = math.tanh %56 : vector<4x32xf32>
    %59 = arith.mulf %57, %58 : vector<4x32xf32>
    %cst_32 = arith.constant dense<0.000000e+00> : vector<4x128xf32>
    %60 = tpu.matmul %59, %1, %cst_32 {dimension_numbers = #tpu.dot_dimension_numbers<[1], [0], [0], [1], [0, 0, 1, 1], [], []>} : vector<4x32xf32>, vector<32x128xf32>, vector<4x128xf32> -> vector<4x128xf32>
    %61 = arith.addf %24, %60 : vector<4x128xf32>
    %62 = arith.negf %61 : vector<4x128xf32>
    %63 = math.exp %62 : vector<4x128xf32>
    %cst_33 = arith.constant 1.000000e+00 : f32
    %64 = vector.broadcast %cst_33 : f32 to vector<4x128xf32>
    %65 = arith.addf %64, %63 : vector<4x128xf32>
    %66 = arith.divf %64, %65 : vector<4x128xf32>
    %67 = vector.extract_strided_slice %61 {offsets = [0, 64], sizes = [4, 32], strides = [1, 1]} : vector<4x128xf32> to vector<4x32xf32>
    %68 = math.tanh %67 : vector<4x32xf32>
    %69 = vector.extract_strided_slice %66 {offsets = [0, 32], sizes = [4, 32], strides = [1, 1]} : vector<4x128xf32> to vector<4x32xf32>
    %70 = arith.mulf %69, %56 : vector<4x32xf32>
    %71 = vector.extract_strided_slice %66 {offsets = [0, 0], sizes = [4, 32], strides = [1, 1]} : vector<4x128xf32> to vector<4x32xf32>
    %72 = arith.mulf %71, %68 : vector<4x32xf32>
    %73 = arith.addf %70, %72 : vector<4x32xf32>
    %74 = vector.extract_strided_slice %66 {offsets = [0, 96], sizes = [4, 32], strides = [1, 1]} : vector<4x128xf32> to vector<4x32xf32>
    %75 = math.tanh %73 : vector<4x32xf32>
    %76 = arith.mulf %74, %75 : vector<4x32xf32>
    %cst_34 = arith.constant dense<0.000000e+00> : vector<4x128xf32>
    %77 = tpu.matmul %76, %1, %cst_34 {dimension_numbers = #tpu.dot_dimension_numbers<[1], [0], [0], [1], [0, 0, 1, 1], [], []>} : vector<4x32xf32>, vector<32x128xf32>, vector<4x128xf32> -> vector<4x128xf32>
    %78 = arith.addf %28, %77 : vector<4x128xf32>
    %79 = arith.negf %78 : vector<4x128xf32>
    %80 = math.exp %79 : vector<4x128xf32>
    %cst_35 = arith.constant 1.000000e+00 : f32
    %81 = vector.broadcast %cst_35 : f32 to vector<4x128xf32>
    %82 = arith.addf %81, %80 : vector<4x128xf32>
    %83 = arith.divf %81, %82 : vector<4x128xf32>
    %84 = vector.extract_strided_slice %78 {offsets = [0, 64], sizes = [4, 32], strides = [1, 1]} : vector<4x128xf32> to vector<4x32xf32>
    %85 = math.tanh %84 : vector<4x32xf32>
    %86 = vector.extract_strided_slice %83 {offsets = [0, 32], sizes = [4, 32], strides = [1, 1]} : vector<4x128xf32> to vector<4x32xf32>
    %87 = arith.mulf %86, %73 : vector<4x32xf32>
    %88 = vector.extract_strided_slice %83 {offsets = [0, 0], sizes = [4, 32], strides = [1, 1]} : vector<4x128xf32> to vector<4x32xf32>
    %89 = arith.mulf %88, %85 : vector<4x32xf32>
    %90 = arith.addf %87, %89 : vector<4x32xf32>
    %91 = vector.extract_strided_slice %83 {offsets = [0, 96], sizes = [4, 32], strides = [1, 1]} : vector<4x128xf32> to vector<4x32xf32>
    %92 = math.tanh %90 : vector<4x32xf32>
    %93 = arith.mulf %91, %92 : vector<4x32xf32>
    %cst_36 = arith.constant dense<0.000000e+00> : vector<4x128xf32>
    %94 = tpu.matmul %93, %1, %cst_36 {dimension_numbers = #tpu.dot_dimension_numbers<[1], [0], [0], [1], [0, 0, 1, 1], [], []>} : vector<4x32xf32>, vector<32x128xf32>, vector<4x128xf32> -> vector<4x128xf32>
    %95 = arith.addf %32, %94 : vector<4x128xf32>
    %96 = arith.negf %95 : vector<4x128xf32>
    %97 = math.exp %96 : vector<4x128xf32>
    %cst_37 = arith.constant 1.000000e+00 : f32
    %98 = vector.broadcast %cst_37 : f32 to vector<4x128xf32>
    %99 = arith.addf %98, %97 : vector<4x128xf32>
    %100 = arith.divf %98, %99 : vector<4x128xf32>
    %101 = vector.extract_strided_slice %95 {offsets = [0, 64], sizes = [4, 32], strides = [1, 1]} : vector<4x128xf32> to vector<4x32xf32>
    %102 = math.tanh %101 : vector<4x32xf32>
    %103 = vector.extract_strided_slice %100 {offsets = [0, 32], sizes = [4, 32], strides = [1, 1]} : vector<4x128xf32> to vector<4x32xf32>
    %104 = arith.mulf %103, %90 : vector<4x32xf32>
    %105 = vector.extract_strided_slice %100 {offsets = [0, 0], sizes = [4, 32], strides = [1, 1]} : vector<4x128xf32> to vector<4x32xf32>
    %106 = arith.mulf %105, %102 : vector<4x32xf32>
    %107 = arith.addf %104, %106 : vector<4x32xf32>
    %108 = vector.extract_strided_slice %100 {offsets = [0, 96], sizes = [4, 32], strides = [1, 1]} : vector<4x128xf32> to vector<4x32xf32>
    %109 = math.tanh %107 : vector<4x32xf32>
    %110 = arith.mulf %108, %109 : vector<4x32xf32>
    %cst_38 = arith.constant dense<0.000000e+00> : vector<4x128xf32>
    %111 = tpu.matmul %110, %1, %cst_38 {dimension_numbers = #tpu.dot_dimension_numbers<[1], [0], [0], [1], [0, 0, 1, 1], [], []>} : vector<4x32xf32>, vector<32x128xf32>, vector<4x128xf32> -> vector<4x128xf32>
    %112 = arith.addf %36, %111 : vector<4x128xf32>
    %113 = arith.negf %112 : vector<4x128xf32>
    %114 = math.exp %113 : vector<4x128xf32>
    %cst_39 = arith.constant 1.000000e+00 : f32
    %115 = vector.broadcast %cst_39 : f32 to vector<4x128xf32>
    %116 = arith.addf %115, %114 : vector<4x128xf32>
    %117 = arith.divf %115, %116 : vector<4x128xf32>
    %118 = vector.extract_strided_slice %112 {offsets = [0, 64], sizes = [4, 32], strides = [1, 1]} : vector<4x128xf32> to vector<4x32xf32>
    %119 = math.tanh %118 : vector<4x32xf32>
    %120 = vector.extract_strided_slice %117 {offsets = [0, 32], sizes = [4, 32], strides = [1, 1]} : vector<4x128xf32> to vector<4x32xf32>
    %121 = arith.mulf %120, %107 : vector<4x32xf32>
    %122 = vector.extract_strided_slice %117 {offsets = [0, 0], sizes = [4, 32], strides = [1, 1]} : vector<4x128xf32> to vector<4x32xf32>
    %123 = arith.mulf %122, %119 : vector<4x32xf32>
    %124 = arith.addf %121, %123 : vector<4x32xf32>
    %125 = vector.extract_strided_slice %117 {offsets = [0, 96], sizes = [4, 32], strides = [1, 1]} : vector<4x128xf32> to vector<4x32xf32>
    %126 = math.tanh %124 : vector<4x32xf32>
    %127 = arith.mulf %125, %126 : vector<4x32xf32>
    %cst_40 = arith.constant dense<0.000000e+00> : vector<4x128xf32>
    %128 = tpu.matmul %127, %1, %cst_40 {dimension_numbers = #tpu.dot_dimension_numbers<[1], [0], [0], [1], [0, 0, 1, 1], [], []>} : vector<4x32xf32>, vector<32x128xf32>, vector<4x128xf32> -> vector<4x128xf32>
    %129 = arith.addf %40, %128 : vector<4x128xf32>
    %130 = arith.negf %129 : vector<4x128xf32>
    %131 = math.exp %130 : vector<4x128xf32>
    %cst_41 = arith.constant 1.000000e+00 : f32
    %132 = vector.broadcast %cst_41 : f32 to vector<4x128xf32>
    %133 = arith.addf %132, %131 : vector<4x128xf32>
    %134 = arith.divf %132, %133 : vector<4x128xf32>
    %135 = vector.extract_strided_slice %129 {offsets = [0, 64], sizes = [4, 32], strides = [1, 1]} : vector<4x128xf32> to vector<4x32xf32>
    %136 = math.tanh %135 : vector<4x32xf32>
    %137 = vector.extract_strided_slice %134 {offsets = [0, 32], sizes = [4, 32], strides = [1, 1]} : vector<4x128xf32> to vector<4x32xf32>
    %138 = arith.mulf %137, %124 : vector<4x32xf32>
    %139 = vector.extract_strided_slice %134 {offsets = [0, 0], sizes = [4, 32], strides = [1, 1]} : vector<4x128xf32> to vector<4x32xf32>
    %140 = arith.mulf %139, %136 : vector<4x32xf32>
    %141 = arith.addf %138, %140 : vector<4x32xf32>
    %142 = vector.extract_strided_slice %134 {offsets = [0, 96], sizes = [4, 32], strides = [1, 1]} : vector<4x128xf32> to vector<4x32xf32>
    %143 = math.tanh %141 : vector<4x32xf32>
    %144 = arith.mulf %142, %143 : vector<4x32xf32>
    %c0_42 = arith.constant 0 : index
    %c5_43 = arith.constant 5 : index
    %c0_44 = arith.constant 0 : index
    %145 = vector.load %arg0[%c0_42, %c5_43, %c0_44] : memref<4x6x10xf32, #tpu.memory_space<vmem>>, vector<4x1x10xf32>
    %146 = vector.shape_cast %145 : vector<4x1x10xf32> to vector<4x10xf32>
    %147 = tpu.concatenate %144, %144 in 1 : vector<4x32xf32>, vector<4x32xf32> -> vector<4x64xf32>
    %148 = tpu.concatenate %141, %141 in 1 : vector<4x32xf32>, vector<4x32xf32> -> vector<4x64xf32>
    %149 = vector.extract_strided_slice %146 {offsets = [0, 0], sizes = [4, 8], strides = [1, 1]} : vector<4x10xf32> to vector<4x8xf32>
    %150 = vector.extract_strided_slice %146 {offsets = [0, 9], sizes = [4, 1], strides = [1, 1]} : vector<4x10xf32> to vector<4x1xf32>
    %151 = tpu.iota {dimensions = array<i32: 1>} : vector<4x8xi32>
    %cst_45 = arith.constant dense<0.000000e+00> : vector<4x256xf32>
    %152 = tpu.matmul %147, %9, %cst_45 {dimension_numbers = #tpu.dot_dimension_numbers<[1], [0], [0], [1], [0, 0, 1, 1], [], []>} : vector<4x64xf32>, vector<64x256xf32>, vector<4x256xf32> -> vector<4x256xf32>
    %cst_46 = arith.constant dense<0.000000e+00> : vector<4x256xf32>
    %153 = tpu.matmul %149, %10, %cst_46 {dimension_numbers = #tpu.dot_dimension_numbers<[1], [0], [0], [1], [0, 0, 1, 1], [], []>} : vector<4x8xf32>, vector<8x256xf32>, vector<4x256xf32> -> vector<4x256xf32>
    %154 = arith.addf %152, %153 : vector<4x256xf32>
    %155 = vector.broadcast %150 : vector<4x1xf32> to vector<4x256xf32>
    %156 = arith.mulf %155, %13 : vector<4x256xf32>
    %157 = arith.addf %154, %156 : vector<4x256xf32>
    %158 = arith.addf %157, %16 : vector<4x256xf32>
    %159 = vector.extract_strided_slice %158 {offsets = [0, 0], sizes = [4, 192], strides = [1, 1]} : vector<4x256xf32> to vector<4x192xf32>
    %160 = arith.negf %159 : vector<4x192xf32>
    %161 = math.exp %160 : vector<4x192xf32>
    %cst_47 = arith.constant 1.000000e+00 : f32
    %162 = vector.broadcast %cst_47 : f32 to vector<4x192xf32>
    %163 = arith.addf %162, %161 : vector<4x192xf32>
    %164 = arith.divf %162, %163 : vector<4x192xf32>
    %165 = vector.extract_strided_slice %158 {offsets = [0, 192], sizes = [4, 64], strides = [1, 1]} : vector<4x256xf32> to vector<4x64xf32>
    %166 = math.tanh %165 : vector<4x64xf32>
    %167 = vector.extract_strided_slice %164 {offsets = [0, 64], sizes = [4, 64], strides = [1, 1]} : vector<4x192xf32> to vector<4x64xf32>
    %168 = arith.mulf %167, %148 : vector<4x64xf32>
    %169 = vector.extract_strided_slice %164 {offsets = [0, 0], sizes = [4, 64], strides = [1, 1]} : vector<4x192xf32> to vector<4x64xf32>
    %170 = arith.mulf %169, %166 : vector<4x64xf32>
    %171 = arith.addf %168, %170 : vector<4x64xf32>
    %172 = vector.extract_strided_slice %164 {offsets = [0, 128], sizes = [4, 64], strides = [1, 1]} : vector<4x192xf32> to vector<4x64xf32>
    %173 = math.tanh %171 : vector<4x64xf32>
    %174 = arith.mulf %172, %173 : vector<4x64xf32>
    %cst_48 = arith.constant dense<0.000000e+00> : vector<4x128xf32>
    %175 = tpu.matmul %174, %5, %cst_48 {dimension_numbers = #tpu.dot_dimension_numbers<[1], [0], [0], [1], [0, 0, 1, 1], [], []>} : vector<4x64xf32>, vector<64x128xf32>, vector<4x128xf32> -> vector<4x128xf32>
    %176 = arith.addf %175, %8 : vector<4x128xf32>
    %177 = vector.extract_strided_slice %176 {offsets = [0, 0], sizes = [4, 16], strides = [1, 1]} : vector<4x128xf32> to vector<4x16xf32>
    %c0_49 = arith.constant 0 : index
    %c0_50 = arith.constant 0 : index
    %c0_51 = arith.constant 0 : index
    %178 = vector.load %arg6[%c0_49, %c0_50, %c0_51] : memref<4x5x16xf32, #tpu.memory_space<vmem>>, vector<4x1x16xf32>
    %179 = vector.shape_cast %178 : vector<4x1x16xf32> to vector<4x16xf32>
    %180 = vector.shape_cast %177 : vector<4x16xf32> to vector<4x1x16xf32>
    tpu.vector_store %arg6[%c0_49, %c0_50, %c0_51], %180 {strides = array<i32>} : memref<4x5x16xf32, #tpu.memory_space<vmem>>, vector<4x1x16xf32>,
    %181 = vector.extract_strided_slice %176 {offsets = [0, 0], sizes = [4, 8], strides = [1, 1]} : vector<4x128xf32> to vector<4x8xf32>
    %182 = vector.extract_strided_slice %176 {offsets = [0, 8], sizes = [4, 1], strides = [1, 1]} : vector<4x128xf32> to vector<4x1xf32>
    %183 = tpu.bitcast %181 : vector<4x8xf32> -> vector<4x8xi32>
    %c31_i32 = arith.constant 31 : i32
    %184 = vector.broadcast %c31_i32 : i32 to vector<4x8xi32>
    %185 = arith.shrsi %183, %184 : vector<4x8xi32>
    %c2147483647_i32 = arith.constant 2147483647 : i32
    %186 = vector.broadcast %c2147483647_i32 : i32 to vector<4x8xi32>
    %187 = arith.andi %185, %186 : vector<4x8xi32>
    %188 = arith.xori %183, %187 : vector<4x8xi32>
    %c-8_i32 = arith.constant -8 : i32
    %189 = vector.broadcast %c-8_i32 : i32 to vector<4x8xi32>
    %190 = arith.andi %188, %189 : vector<4x8xi32>
    %c7_i32 = arith.constant 7 : i32
    %191 = vector.broadcast %c7_i32 : i32 to vector<4x8xi32>
    %192 = arith.subi %191, %151 : vector<4x8xi32>
    %193 = arith.ori %190, %192 : vector<4x8xi32>
    %cst_52 = arith.constant dense<-2147483648> : vector<4xi32>
    %194 = vector.multi_reduction <maxsi>, %193, %cst_52 [1] : vector<4x8xi32> to vector<4xi32>
    %195 = vector.shape_cast %194 : vector<4xi32> to vector<4x1xi32>
    %196 = vector.broadcast %195 : vector<4x1xi32> to vector<4x8xi32>
    %197 = arith.cmpi eq, %193, %196 : vector<4x8xi32>
    %c0_i32 = arith.constant 0 : i32
    %198 = vector.broadcast %c0_i32 : i32 to vector<4x8xi32>
    %199 = arith.cmpi ne, %151, %198 : vector<4x8xi32>
    %200 = arith.andi %197, %199 : vector<4x8xi1>
    %201 = arith.extui %200 : vector<4x8xi1> to vector<4x8xi32>
    %202 = arith.sitofp %201 : vector<4x8xi32> to vector<4x8xf32>
    %c0_53 = arith.constant 0 : index
    %c0_54 = arith.constant 0 : index
    %203 = vector.load %arg1[%c0_53, %c0_54] : memref<4x5xi32, #tpu.memory_space<vmem>>, vector<4x1xi32>
    %204 = vector.broadcast %203 : vector<4x1xi32> to vector<4x8xi32>
    %205 = arith.cmpi eq, %204, %151 : vector<4x8xi32>
    %c0_i32_55 = arith.constant 0 : i32
    %206 = vector.broadcast %c0_i32_55 : i32 to vector<4x8xi32>
    %207 = arith.cmpi ne, %151, %206 : vector<4x8xi32>
    %208 = arith.andi %205, %207 : vector<4x8xi1>
    %209 = arith.extui %208 : vector<4x8xi1> to vector<4x8xi32>
    %210 = arith.sitofp %209 : vector<4x8xi32> to vector<4x8xf32>
    %c0_56 = arith.constant 0 : index
    %211 = memref.load %arg3[%c0_56] : memref<10xi32, #tpu.memory_space<smem>>
    %c0_i32_57 = arith.constant 0 : i32
    %212 = arith.cmpi sgt, %211, %c0_i32_57 : i32
    %213 = arith.select %212, %210, %202 : vector<4x8xf32>
    %c5_58 = arith.constant 5 : index
    %214 = memref.load %arg3[%c5_58] : memref<10xi32, #tpu.memory_space<smem>>
    %c0_i32_59 = arith.constant 0 : i32
    %215 = arith.cmpi sgt, %214, %c0_i32_59 : i32
    %c0_60 = arith.constant 0 : index
    %c0_61 = arith.constant 0 : index
    %216 = vector.load %arg2[%c0_60, %c0_61] : memref<4x5xf32, #tpu.memory_space<vmem>>, vector<4x1xf32>
    %217 = arith.select %215, %216, %182 : vector<4x1xf32>
    %cst_62 = arith.constant dense<0.000000e+00> : vector<4x256xf32>
    %218 = tpu.matmul %174, %9, %cst_62 {dimension_numbers = #tpu.dot_dimension_numbers<[1], [0], [0], [1], [0, 0, 1, 1], [], []>} : vector<4x64xf32>, vector<64x256xf32>, vector<4x256xf32> -> vector<4x256xf32>
    %cst_63 = arith.constant dense<0.000000e+00> : vector<4x256xf32>
    %219 = tpu.matmul %213, %10, %cst_63 {dimension_numbers = #tpu.dot_dimension_numbers<[1], [0], [0], [1], [0, 0, 1, 1], [], []>} : vector<4x8xf32>, vector<8x256xf32>, vector<4x256xf32> -> vector<4x256xf32>
    %220 = arith.addf %218, %219 : vector<4x256xf32>
    %221 = vector.broadcast %217 : vector<4x1xf32> to vector<4x256xf32>
    %222 = arith.mulf %221, %13 : vector<4x256xf32>
    %223 = arith.addf %220, %222 : vector<4x256xf32>
    %224 = arith.addf %223, %16 : vector<4x256xf32>
    %225 = vector.extract_strided_slice %224 {offsets = [0, 0], sizes = [4, 192], strides = [1, 1]} : vector<4x256xf32> to vector<4x192xf32>
    %226 = arith.negf %225 : vector<4x192xf32>
    %227 = math.exp %226 : vector<4x192xf32>
    %cst_64 = arith.constant 1.000000e+00 : f32
    %228 = vector.broadcast %cst_64 : f32 to vector<4x192xf32>
    %229 = arith.addf %228, %227 : vector<4x192xf32>
    %230 = arith.divf %228, %229 : vector<4x192xf32>
    %231 = vector.extract_strided_slice %224 {offsets = [0, 192], sizes = [4, 64], strides = [1, 1]} : vector<4x256xf32> to vector<4x64xf32>
    %232 = math.tanh %231 : vector<4x64xf32>
    %233 = vector.extract_strided_slice %230 {offsets = [0, 64], sizes = [4, 64], strides = [1, 1]} : vector<4x192xf32> to vector<4x64xf32>
    %234 = arith.mulf %233, %171 : vector<4x64xf32>
    %235 = vector.extract_strided_slice %230 {offsets = [0, 0], sizes = [4, 64], strides = [1, 1]} : vector<4x192xf32> to vector<4x64xf32>
    %236 = arith.mulf %235, %232 : vector<4x64xf32>
    %237 = arith.addf %234, %236 : vector<4x64xf32>
    %238 = vector.extract_strided_slice %230 {offsets = [0, 128], sizes = [4, 64], strides = [1, 1]} : vector<4x192xf32> to vector<4x64xf32>
    %239 = math.tanh %237 : vector<4x64xf32>
    %240 = arith.mulf %238, %239 : vector<4x64xf32>
    %cst_65 = arith.constant dense<0.000000e+00> : vector<4x128xf32>
    %241 = tpu.matmul %240, %5, %cst_65 {dimension_numbers = #tpu.dot_dimension_numbers<[1], [0], [0], [1], [0, 0, 1, 1], [], []>} : vector<4x64xf32>, vector<64x128xf32>, vector<4x128xf32> -> vector<4x128xf32>
    %242 = arith.addf %241, %8 : vector<4x128xf32>
    %243 = vector.extract_strided_slice %242 {offsets = [0, 0], sizes = [4, 16], strides = [1, 1]} : vector<4x128xf32> to vector<4x16xf32>
    %c0_66 = arith.constant 0 : index
    %c1_67 = arith.constant 1 : index
    %c0_68 = arith.constant 0 : index
    %244 = vector.load %arg6[%c0_66, %c1_67, %c0_68] : memref<4x5x16xf32, #tpu.memory_space<vmem>>, vector<4x1x16xf32>
    %245 = vector.shape_cast %244 : vector<4x1x16xf32> to vector<4x16xf32>
    %246 = vector.shape_cast %243 : vector<4x16xf32> to vector<4x1x16xf32>
    tpu.vector_store %arg6[%c0_66, %c1_67, %c0_68], %246 {strides = array<i32>} : memref<4x5x16xf32, #tpu.memory_space<vmem>>, vector<4x1x16xf32>,
    %247 = vector.extract_strided_slice %242 {offsets = [0, 0], sizes = [4, 8], strides = [1, 1]} : vector<4x128xf32> to vector<4x8xf32>
    %248 = vector.extract_strided_slice %242 {offsets = [0, 8], sizes = [4, 1], strides = [1, 1]} : vector<4x128xf32> to vector<4x1xf32>
    %249 = tpu.bitcast %247 : vector<4x8xf32> -> vector<4x8xi32>
    %c31_i32_69 = arith.constant 31 : i32
    %250 = vector.broadcast %c31_i32_69 : i32 to vector<4x8xi32>
    %251 = arith.shrsi %249, %250 : vector<4x8xi32>
    %c2147483647_i32_70 = arith.constant 2147483647 : i32
    %252 = vector.broadcast %c2147483647_i32_70 : i32 to vector<4x8xi32>
    %253 = arith.andi %251, %252 : vector<4x8xi32>
    %254 = arith.xori %249, %253 : vector<4x8xi32>
    %c-8_i32_71 = arith.constant -8 : i32
    %255 = vector.broadcast %c-8_i32_71 : i32 to vector<4x8xi32>
    %256 = arith.andi %254, %255 : vector<4x8xi32>
    %c7_i32_72 = arith.constant 7 : i32
    %257 = vector.broadcast %c7_i32_72 : i32 to vector<4x8xi32>
    %258 = arith.subi %257, %151 : vector<4x8xi32>
    %259 = arith.ori %256, %258 : vector<4x8xi32>
    %cst_73 = arith.constant dense<-2147483648> : vector<4xi32>
    %260 = vector.multi_reduction <maxsi>, %259, %cst_73 [1] : vector<4x8xi32> to vector<4xi32>
    %261 = vector.shape_cast %260 : vector<4xi32> to vector<4x1xi32>
    %262 = vector.broadcast %261 : vector<4x1xi32> to vector<4x8xi32>
    %263 = arith.cmpi eq, %259, %262 : vector<4x8xi32>
    %c0_i32_74 = arith.constant 0 : i32
    %264 = vector.broadcast %c0_i32_74 : i32 to vector<4x8xi32>
    %265 = arith.cmpi ne, %151, %264 : vector<4x8xi32>
    %266 = arith.andi %263, %265 : vector<4x8xi1>
    %267 = arith.extui %266 : vector<4x8xi1> to vector<4x8xi32>
    %268 = arith.sitofp %267 : vector<4x8xi32> to vector<4x8xf32>
    %c0_75 = arith.constant 0 : index
    %c1_76 = arith.constant 1 : index
    %269 = vector.load %arg1[%c0_75, %c1_76] : memref<4x5xi32, #tpu.memory_space<vmem>>, vector<4x1xi32>
    %270 = vector.broadcast %269 : vector<4x1xi32> to vector<4x8xi32>
    %271 = arith.cmpi eq, %270, %151 : vector<4x8xi32>
    %c0_i32_77 = arith.constant 0 : i32
    %272 = vector.broadcast %c0_i32_77 : i32 to vector<4x8xi32>
    %273 = arith.cmpi ne, %151, %272 : vector<4x8xi32>
    %274 = arith.andi %271, %273 : vector<4x8xi1>
    %275 = arith.extui %274 : vector<4x8xi1> to vector<4x8xi32>
    %276 = arith.sitofp %275 : vector<4x8xi32> to vector<4x8xf32>
    %c1_78 = arith.constant 1 : index
    %277 = memref.load %arg3[%c1_78] : memref<10xi32, #tpu.memory_space<smem>>
    %c0_i32_79 = arith.constant 0 : i32
    %278 = arith.cmpi sgt, %277, %c0_i32_79 : i32
    %279 = arith.select %278, %276, %268 : vector<4x8xf32>
    %c6 = arith.constant 6 : index
    %280 = memref.load %arg3[%c6] : memref<10xi32, #tpu.memory_space<smem>>
    %c0_i32_80 = arith.constant 0 : i32
    %281 = arith.cmpi sgt, %280, %c0_i32_80 : i32
    %c0_81 = arith.constant 0 : index
    %c1_82 = arith.constant 1 : index
    %282 = vector.load %arg2[%c0_81, %c1_82] : memref<4x5xf32, #tpu.memory_space<vmem>>, vector<4x1xf32>
    %283 = arith.select %281, %282, %248 : vector<4x1xf32>
    %cst_83 = arith.constant dense<0.000000e+00> : vector<4x256xf32>
    %284 = tpu.matmul %240, %9, %cst_83 {dimension_numbers = #tpu.dot_dimension_numbers<[1], [0], [0], [1], [0, 0, 1, 1], [], []>} : vector<4x64xf32>, vector<64x256xf32>, vector<4x256xf32> -> vector<4x256xf32>
    %cst_84 = arith.constant dense<0.000000e+00> : vector<4x256xf32>
    %285 = tpu.matmul %279, %10, %cst_84 {dimension_numbers = #tpu.dot_dimension_numbers<[1], [0], [0], [1], [0, 0, 1, 1], [], []>} : vector<4x8xf32>, vector<8x256xf32>, vector<4x256xf32> -> vector<4x256xf32>
    %286 = arith.addf %284, %285 : vector<4x256xf32>
    %287 = vector.broadcast %283 : vector<4x1xf32> to vector<4x256xf32>
    %288 = arith.mulf %287, %13 : vector<4x256xf32>
    %289 = arith.addf %286, %288 : vector<4x256xf32>
    %290 = arith.addf %289, %16 : vector<4x256xf32>
    %291 = vector.extract_strided_slice %290 {offsets = [0, 0], sizes = [4, 192], strides = [1, 1]} : vector<4x256xf32> to vector<4x192xf32>
    %292 = arith.negf %291 : vector<4x192xf32>
    %293 = math.exp %292 : vector<4x192xf32>
    %cst_85 = arith.constant 1.000000e+00 : f32
    %294 = vector.broadcast %cst_85 : f32 to vector<4x192xf32>
    %295 = arith.addf %294, %293 : vector<4x192xf32>
    %296 = arith.divf %294, %295 : vector<4x192xf32>
    %297 = vector.extract_strided_slice %290 {offsets = [0, 192], sizes = [4, 64], strides = [1, 1]} : vector<4x256xf32> to vector<4x64xf32>
    %298 = math.tanh %297 : vector<4x64xf32>
    %299 = vector.extract_strided_slice %296 {offsets = [0, 64], sizes = [4, 64], strides = [1, 1]} : vector<4x192xf32> to vector<4x64xf32>
    %300 = arith.mulf %299, %237 : vector<4x64xf32>
    %301 = vector.extract_strided_slice %296 {offsets = [0, 0], sizes = [4, 64], strides = [1, 1]} : vector<4x192xf32> to vector<4x64xf32>
    %302 = arith.mulf %301, %298 : vector<4x64xf32>
    %303 = arith.addf %300, %302 : vector<4x64xf32>
    %304 = vector.extract_strided_slice %296 {offsets = [0, 128], sizes = [4, 64], strides = [1, 1]} : vector<4x192xf32> to vector<4x64xf32>
    %305 = math.tanh %303 : vector<4x64xf32>
    %306 = arith.mulf %304, %305 : vector<4x64xf32>
    %cst_86 = arith.constant dense<0.000000e+00> : vector<4x128xf32>
    %307 = tpu.matmul %306, %5, %cst_86 {dimension_numbers = #tpu.dot_dimension_numbers<[1], [0], [0], [1], [0, 0, 1, 1], [], []>} : vector<4x64xf32>, vector<64x128xf32>, vector<4x128xf32> -> vector<4x128xf32>
    %308 = arith.addf %307, %8 : vector<4x128xf32>
    %309 = vector.extract_strided_slice %308 {offsets = [0, 0], sizes = [4, 16], strides = [1, 1]} : vector<4x128xf32> to vector<4x16xf32>
    %c0_87 = arith.constant 0 : index
    %c2_88 = arith.constant 2 : index
    %c0_89 = arith.constant 0 : index
    %310 = vector.load %arg6[%c0_87, %c2_88, %c0_89] : memref<4x5x16xf32, #tpu.memory_space<vmem>>, vector<4x1x16xf32>
    %311 = vector.shape_cast %310 : vector<4x1x16xf32> to vector<4x16xf32>
    %312 = vector.shape_cast %309 : vector<4x16xf32> to vector<4x1x16xf32>
    tpu.vector_store %arg6[%c0_87, %c2_88, %c0_89], %312 {strides = array<i32>} : memref<4x5x16xf32, #tpu.memory_space<vmem>>, vector<4x1x16xf32>,
    %313 = vector.extract_strided_slice %308 {offsets = [0, 0], sizes = [4, 8], strides = [1, 1]} : vector<4x128xf32> to vector<4x8xf32>
    %314 = vector.extract_strided_slice %308 {offsets = [0, 8], sizes = [4, 1], strides = [1, 1]} : vector<4x128xf32> to vector<4x1xf32>
    %315 = tpu.bitcast %313 : vector<4x8xf32> -> vector<4x8xi32>
    %c31_i32_90 = arith.constant 31 : i32
    %316 = vector.broadcast %c31_i32_90 : i32 to vector<4x8xi32>
    %317 = arith.shrsi %315, %316 : vector<4x8xi32>
    %c2147483647_i32_91 = arith.constant 2147483647 : i32
    %318 = vector.broadcast %c2147483647_i32_91 : i32 to vector<4x8xi32>
    %319 = arith.andi %317, %318 : vector<4x8xi32>
    %320 = arith.xori %315, %319 : vector<4x8xi32>
    %c-8_i32_92 = arith.constant -8 : i32
    %321 = vector.broadcast %c-8_i32_92 : i32 to vector<4x8xi32>
    %322 = arith.andi %320, %321 : vector<4x8xi32>
    %c7_i32_93 = arith.constant 7 : i32
    %323 = vector.broadcast %c7_i32_93 : i32 to vector<4x8xi32>
    %324 = arith.subi %323, %151 : vector<4x8xi32>
    %325 = arith.ori %322, %324 : vector<4x8xi32>
    %cst_94 = arith.constant dense<-2147483648> : vector<4xi32>
    %326 = vector.multi_reduction <maxsi>, %325, %cst_94 [1] : vector<4x8xi32> to vector<4xi32>
    %327 = vector.shape_cast %326 : vector<4xi32> to vector<4x1xi32>
    %328 = vector.broadcast %327 : vector<4x1xi32> to vector<4x8xi32>
    %329 = arith.cmpi eq, %325, %328 : vector<4x8xi32>
    %c0_i32_95 = arith.constant 0 : i32
    %330 = vector.broadcast %c0_i32_95 : i32 to vector<4x8xi32>
    %331 = arith.cmpi ne, %151, %330 : vector<4x8xi32>
    %332 = arith.andi %329, %331 : vector<4x8xi1>
    %333 = arith.extui %332 : vector<4x8xi1> to vector<4x8xi32>
    %334 = arith.sitofp %333 : vector<4x8xi32> to vector<4x8xf32>
    %c0_96 = arith.constant 0 : index
    %c2_97 = arith.constant 2 : index
    %335 = vector.load %arg1[%c0_96, %c2_97] : memref<4x5xi32, #tpu.memory_space<vmem>>, vector<4x1xi32>
    %336 = vector.broadcast %335 : vector<4x1xi32> to vector<4x8xi32>
    %337 = arith.cmpi eq, %336, %151 : vector<4x8xi32>
    %c0_i32_98 = arith.constant 0 : i32
    %338 = vector.broadcast %c0_i32_98 : i32 to vector<4x8xi32>
    %339 = arith.cmpi ne, %151, %338 : vector<4x8xi32>
    %340 = arith.andi %337, %339 : vector<4x8xi1>
    %341 = arith.extui %340 : vector<4x8xi1> to vector<4x8xi32>
    %342 = arith.sitofp %341 : vector<4x8xi32> to vector<4x8xf32>
    %c2_99 = arith.constant 2 : index
    %343 = memref.load %arg3[%c2_99] : memref<10xi32, #tpu.memory_space<smem>>
    %c0_i32_100 = arith.constant 0 : i32
    %344 = arith.cmpi sgt, %343, %c0_i32_100 : i32
    %345 = arith.select %344, %342, %334 : vector<4x8xf32>
    %c7 = arith.constant 7 : index
    %346 = memref.load %arg3[%c7] : memref<10xi32, #tpu.memory_space<smem>>
    %c0_i32_101 = arith.constant 0 : i32
    %347 = arith.cmpi sgt, %346, %c0_i32_101 : i32
    %c0_102 = arith.constant 0 : index
    %c2_103 = arith.constant 2 : index
    %348 = vector.load %arg2[%c0_102, %c2_103] : memref<4x5xf32, #tpu.memory_space<vmem>>, vector<4x1xf32>
    %349 = arith.select %347, %348, %314 : vector<4x1xf32>
    %cst_104 = arith.constant dense<0.000000e+00> : vector<4x256xf32>
    %350 = tpu.matmul %306, %9, %cst_104 {dimension_numbers = #tpu.dot_dimension_numbers<[1], [0], [0], [1], [0, 0, 1, 1], [], []>} : vector<4x64xf32>, vector<64x256xf32>, vector<4x256xf32> -> vector<4x256xf32>
    %cst_105 = arith.constant dense<0.000000e+00> : vector<4x256xf32>
    %351 = tpu.matmul %345, %10, %cst_105 {dimension_numbers = #tpu.dot_dimension_numbers<[1], [0], [0], [1], [0, 0, 1, 1], [], []>} : vector<4x8xf32>, vector<8x256xf32>, vector<4x256xf32> -> vector<4x256xf32>
    %352 = arith.addf %350, %351 : vector<4x256xf32>
    %353 = vector.broadcast %349 : vector<4x1xf32> to vector<4x256xf32>
    %354 = arith.mulf %353, %13 : vector<4x256xf32>
    %355 = arith.addf %352, %354 : vector<4x256xf32>
    %356 = arith.addf %355, %16 : vector<4x256xf32>
    %357 = vector.extract_strided_slice %356 {offsets = [0, 0], sizes = [4, 192], strides = [1, 1]} : vector<4x256xf32> to vector<4x192xf32>
    %358 = arith.negf %357 : vector<4x192xf32>
    %359 = math.exp %358 : vector<4x192xf32>
    %cst_106 = arith.constant 1.000000e+00 : f32
    %360 = vector.broadcast %cst_106 : f32 to vector<4x192xf32>
    %361 = arith.addf %360, %359 : vector<4x192xf32>
    %362 = arith.divf %360, %361 : vector<4x192xf32>
    %363 = vector.extract_strided_slice %356 {offsets = [0, 192], sizes = [4, 64], strides = [1, 1]} : vector<4x256xf32> to vector<4x64xf32>
    %364 = math.tanh %363 : vector<4x64xf32>
    %365 = vector.extract_strided_slice %362 {offsets = [0, 64], sizes = [4, 64], strides = [1, 1]} : vector<4x192xf32> to vector<4x64xf32>
    %366 = arith.mulf %365, %303 : vector<4x64xf32>
    %367 = vector.extract_strided_slice %362 {offsets = [0, 0], sizes = [4, 64], strides = [1, 1]} : vector<4x192xf32> to vector<4x64xf32>
    %368 = arith.mulf %367, %364 : vector<4x64xf32>
    %369 = arith.addf %366, %368 : vector<4x64xf32>
    %370 = vector.extract_strided_slice %362 {offsets = [0, 128], sizes = [4, 64], strides = [1, 1]} : vector<4x192xf32> to vector<4x64xf32>
    %371 = math.tanh %369 : vector<4x64xf32>
    %372 = arith.mulf %370, %371 : vector<4x64xf32>
    %cst_107 = arith.constant dense<0.000000e+00> : vector<4x128xf32>
    %373 = tpu.matmul %372, %5, %cst_107 {dimension_numbers = #tpu.dot_dimension_numbers<[1], [0], [0], [1], [0, 0, 1, 1], [], []>} : vector<4x64xf32>, vector<64x128xf32>, vector<4x128xf32> -> vector<4x128xf32>
    %374 = arith.addf %373, %8 : vector<4x128xf32>
    %375 = vector.extract_strided_slice %374 {offsets = [0, 0], sizes = [4, 16], strides = [1, 1]} : vector<4x128xf32> to vector<4x16xf32>
    %c0_108 = arith.constant 0 : index
    %c3_109 = arith.constant 3 : index
    %c0_110 = arith.constant 0 : index
    %376 = vector.load %arg6[%c0_108, %c3_109, %c0_110] : memref<4x5x16xf32, #tpu.memory_space<vmem>>, vector<4x1x16xf32>
    %377 = vector.shape_cast %376 : vector<4x1x16xf32> to vector<4x16xf32>
    %378 = vector.shape_cast %375 : vector<4x16xf32> to vector<4x1x16xf32>
    tpu.vector_store %arg6[%c0_108, %c3_109, %c0_110], %378 {strides = array<i32>} : memref<4x5x16xf32, #tpu.memory_space<vmem>>, vector<4x1x16xf32>,
    %379 = vector.extract_strided_slice %374 {offsets = [0, 0], sizes = [4, 8], strides = [1, 1]} : vector<4x128xf32> to vector<4x8xf32>
    %380 = vector.extract_strided_slice %374 {offsets = [0, 8], sizes = [4, 1], strides = [1, 1]} : vector<4x128xf32> to vector<4x1xf32>
    %381 = tpu.bitcast %379 : vector<4x8xf32> -> vector<4x8xi32>
    %c31_i32_111 = arith.constant 31 : i32
    %382 = vector.broadcast %c31_i32_111 : i32 to vector<4x8xi32>
    %383 = arith.shrsi %381, %382 : vector<4x8xi32>
    %c2147483647_i32_112 = arith.constant 2147483647 : i32
    %384 = vector.broadcast %c2147483647_i32_112 : i32 to vector<4x8xi32>
    %385 = arith.andi %383, %384 : vector<4x8xi32>
    %386 = arith.xori %381, %385 : vector<4x8xi32>
    %c-8_i32_113 = arith.constant -8 : i32
    %387 = vector.broadcast %c-8_i32_113 : i32 to vector<4x8xi32>
    %388 = arith.andi %386, %387 : vector<4x8xi32>
    %c7_i32_114 = arith.constant 7 : i32
    %389 = vector.broadcast %c7_i32_114 : i32 to vector<4x8xi32>
    %390 = arith.subi %389, %151 : vector<4x8xi32>
    %391 = arith.ori %388, %390 : vector<4x8xi32>
    %cst_115 = arith.constant dense<-2147483648> : vector<4xi32>
    %392 = vector.multi_reduction <maxsi>, %391, %cst_115 [1] : vector<4x8xi32> to vector<4xi32>
    %393 = vector.shape_cast %392 : vector<4xi32> to vector<4x1xi32>
    %394 = vector.broadcast %393 : vector<4x1xi32> to vector<4x8xi32>
    %395 = arith.cmpi eq, %391, %394 : vector<4x8xi32>
    %c0_i32_116 = arith.constant 0 : i32
    %396 = vector.broadcast %c0_i32_116 : i32 to vector<4x8xi32>
    %397 = arith.cmpi ne, %151, %396 : vector<4x8xi32>
    %398 = arith.andi %395, %397 : vector<4x8xi1>
    %399 = arith.extui %398 : vector<4x8xi1> to vector<4x8xi32>
    %400 = arith.sitofp %399 : vector<4x8xi32> to vector<4x8xf32>
    %c0_117 = arith.constant 0 : index
    %c3_118 = arith.constant 3 : index
    %401 = vector.load %arg1[%c0_117, %c3_118] : memref<4x5xi32, #tpu.memory_space<vmem>>, vector<4x1xi32>
    %402 = vector.broadcast %401 : vector<4x1xi32> to vector<4x8xi32>
    %403 = arith.cmpi eq, %402, %151 : vector<4x8xi32>
    %c0_i32_119 = arith.constant 0 : i32
    %404 = vector.broadcast %c0_i32_119 : i32 to vector<4x8xi32>
    %405 = arith.cmpi ne, %151, %404 : vector<4x8xi32>
    %406 = arith.andi %403, %405 : vector<4x8xi1>
    %407 = arith.extui %406 : vector<4x8xi1> to vector<4x8xi32>
    %408 = arith.sitofp %407 : vector<4x8xi32> to vector<4x8xf32>
    %c3_120 = arith.constant 3 : index
    %409 = memref.load %arg3[%c3_120] : memref<10xi32, #tpu.memory_space<smem>>
    %c0_i32_121 = arith.constant 0 : i32
    %410 = arith.cmpi sgt, %409, %c0_i32_121 : i32
    %411 = arith.select %410, %408, %400 : vector<4x8xf32>
    %c8 = arith.constant 8 : index
    %412 = memref.load %arg3[%c8] : memref<10xi32, #tpu.memory_space<smem>>
    %c0_i32_122 = arith.constant 0 : i32
    %413 = arith.cmpi sgt, %412, %c0_i32_122 : i32
    %c0_123 = arith.constant 0 : index
    %c3_124 = arith.constant 3 : index
    %414 = vector.load %arg2[%c0_123, %c3_124] : memref<4x5xf32, #tpu.memory_space<vmem>>, vector<4x1xf32>
    %415 = arith.select %413, %414, %380 : vector<4x1xf32>
    %cst_125 = arith.constant dense<0.000000e+00> : vector<4x256xf32>
    %416 = tpu.matmul %372, %9, %cst_125 {dimension_numbers = #tpu.dot_dimension_numbers<[1], [0], [0], [1], [0, 0, 1, 1], [], []>} : vector<4x64xf32>, vector<64x256xf32>, vector<4x256xf32> -> vector<4x256xf32>
    %cst_126 = arith.constant dense<0.000000e+00> : vector<4x256xf32>
    %417 = tpu.matmul %411, %10, %cst_126 {dimension_numbers = #tpu.dot_dimension_numbers<[1], [0], [0], [1], [0, 0, 1, 1], [], []>} : vector<4x8xf32>, vector<8x256xf32>, vector<4x256xf32> -> vector<4x256xf32>
    %418 = arith.addf %416, %417 : vector<4x256xf32>
    %419 = vector.broadcast %415 : vector<4x1xf32> to vector<4x256xf32>
    %420 = arith.mulf %419, %13 : vector<4x256xf32>
    %421 = arith.addf %418, %420 : vector<4x256xf32>
    %422 = arith.addf %421, %16 : vector<4x256xf32>
    %423 = vector.extract_strided_slice %422 {offsets = [0, 0], sizes = [4, 192], strides = [1, 1]} : vector<4x256xf32> to vector<4x192xf32>
    %424 = arith.negf %423 : vector<4x192xf32>
    %425 = math.exp %424 : vector<4x192xf32>
    %cst_127 = arith.constant 1.000000e+00 : f32
    %426 = vector.broadcast %cst_127 : f32 to vector<4x192xf32>
    %427 = arith.addf %426, %425 : vector<4x192xf32>
    %428 = arith.divf %426, %427 : vector<4x192xf32>
    %429 = vector.extract_strided_slice %422 {offsets = [0, 192], sizes = [4, 64], strides = [1, 1]} : vector<4x256xf32> to vector<4x64xf32>
    %430 = math.tanh %429 : vector<4x64xf32>
    %431 = vector.extract_strided_slice %428 {offsets = [0, 64], sizes = [4, 64], strides = [1, 1]} : vector<4x192xf32> to vector<4x64xf32>
    %432 = arith.mulf %431, %369 : vector<4x64xf32>
    %433 = vector.extract_strided_slice %428 {offsets = [0, 0], sizes = [4, 64], strides = [1, 1]} : vector<4x192xf32> to vector<4x64xf32>
    %434 = arith.mulf %433, %430 : vector<4x64xf32>
    %435 = arith.addf %432, %434 : vector<4x64xf32>
    %436 = vector.extract_strided_slice %428 {offsets = [0, 128], sizes = [4, 64], strides = [1, 1]} : vector<4x192xf32> to vector<4x64xf32>
    %437 = math.tanh %435 : vector<4x64xf32>
    %438 = arith.mulf %436, %437 : vector<4x64xf32>
    %cst_128 = arith.constant dense<0.000000e+00> : vector<4x128xf32>
    %439 = tpu.matmul %438, %5, %cst_128 {dimension_numbers = #tpu.dot_dimension_numbers<[1], [0], [0], [1], [0, 0, 1, 1], [], []>} : vector<4x64xf32>, vector<64x128xf32>, vector<4x128xf32> -> vector<4x128xf32>
    %440 = arith.addf %439, %8 : vector<4x128xf32>
    %441 = vector.extract_strided_slice %440 {offsets = [0, 0], sizes = [4, 16], strides = [1, 1]} : vector<4x128xf32> to vector<4x16xf32>
    %c0_129 = arith.constant 0 : index
    %c4_130 = arith.constant 4 : index
    %c0_131 = arith.constant 0 : index
    %442 = vector.load %arg6[%c0_129, %c4_130, %c0_131] : memref<4x5x16xf32, #tpu.memory_space<vmem>>, vector<4x1x16xf32>
    %443 = vector.shape_cast %442 : vector<4x1x16xf32> to vector<4x16xf32>
    %444 = vector.shape_cast %441 : vector<4x16xf32> to vector<4x1x16xf32>
    tpu.vector_store %arg6[%c0_129, %c4_130, %c0_131], %444 {strides = array<i32>} : memref<4x5x16xf32, #tpu.memory_space<vmem>>, vector<4x1x16xf32>,
    return
  }
}

</mosaic_0001>

<llo_original>
// kernel: seq2seq_trace_forward.1
$region0: #{seq2seq_trace_forward.1}
  #allocation0 [shape = 'u32[]', space=smem, size = 0x4, offset = 0x4, fixed_abs, tag = 'smem constant byte address 0x4 - core index']
  #allocation1 [shape = 'u32[72,128]{1,0:T(1,128)}', space=vmem, size = 0x9000, scoped, tag = 'internal scratch']
  %s0 = inlined_call_operand.vmem [shape: f32[4,6,10], index: 0, kind: input, shape index: {}]
  %s1 = inlined_call_operand.vmem [shape: s32[4,5], index: 1, kind: input, shape index: {}]
  %s2 = inlined_call_operand.vmem [shape: f32[4,5], index: 2, kind: input, shape index: {}]
  %s3 = inlined_call_operand.vmem [shape: s32[10], index: 3, kind: input, shape index: {}]
  %s4 = inlined_call_operand.hbm [shape: f32[128,128], index: 4, kind: input, shape index: {}]
  %s5 = inlined_call_operand.hbm [shape: f32[88,256], index: 5, kind: input, shape index: {}]
  %s6 = inlined_call_operand.vmem [shape: f32[4,5,16], index: 6, kind: output, shape index: {}]
  %s7 = sld [smem:[#allocation0]]
  $region46: #{seq2seq_trace_forward.1} parent=0
    _
  %s9 = ssub.s32 1, %s7
  %s10 = scalar_select 0, %s9, %s7
  $region1: #{seq2seq_trace_forward.1} parent=0
    #allocation2 [shape = 'u8[512]{0}', space=smem, size = 0x200, scoped, tag = 'input window, operand 3, single buffered']
    #allocation3 [shape = 's32[1]{0}', space=sflag, size = 0x4, scoped, tag = 'scoped memory for seq2seq_trace_forward.1']
    #allocation4 [shape = 's32[1]{0}', space=sflag, size = 0x4, scoped, tag = 'scoped memory for seq2seq_trace_forward.1']
    #allocation5 [shape = 'u8[65536]{0}', space=vmem, size = 0x10000, scoped, tag = 'input window, operand 4, single buffered']
    #allocation6 [shape = 'u8[90112]{0}', space=vmem, size = 0x16000, scoped, tag = 'input window, operand 5, single buffered']
    #allocation7 [shape = 's32[1]{0}', space=sflag, size = 0x4, scoped, tag = 'scoped memory for seq2seq_trace_forward.1']
    %11 = vsyncpa [#allocation4], 0
    %12 = vsyncpa [#allocation3], 0
    %13 = vsyncpa [#allocation7], 0
    // Predicated region
    $region2: #{seq2seq_trace_forward.1} parent=1 // pred_check
      _
    $region3: #{seq2seq_trace_forward.1} parent=1 // pred_check_branch
      %15 = sbr.rel (0) target = $region5
    $region4: #{seq2seq_trace_forward.1} parent=1 // pred_region
      _
    $region5: #{seq2seq_trace_forward.1} parent=1 // pred_fallthru
      _
    // Predicated region
    $region6: #{seq2seq_trace_forward.1} parent=1 // pred_check
      _
    $region7: #{seq2seq_trace_forward.1} parent=1 // pred_check_branch
      %17 = sbr.rel (0) target = $region9
    $region8: #{seq2seq_trace_forward.1} parent=1 // pred_region
      _
    $region9: #{seq2seq_trace_forward.1} parent=1 // pred_fallthru
      _
    // Predicated region
    $region10: #{seq2seq_trace_forward.1} parent=1 // pred_check
      _
    $region11: #{seq2seq_trace_forward.1} parent=1 // pred_check_branch
      %19 = sbr.rel (0) target = $region13
    $region12: #{seq2seq_trace_forward.1} parent=1 // pred_region
      _
    $region13: #{seq2seq_trace_forward.1} parent=1 // pred_fallthru
      _
    // Predicated region
    $region14: #{seq2seq_trace_forward.1} parent=1 // pred_check
      _
    $region15: #{seq2seq_trace_forward.1} parent=1 // pred_check_branch
      %21 = sbr.rel (0) target = $region17
    $region16: #{seq2seq_trace_forward.1} parent=1 // pred_region
      %23 = vsyncadd [#allocation4], 0
      %s25 = sshll.u32 %s3, 4
      %s26 = int_to_ptr.vmem [resolvable:$true] %s25
      %28 = dma.vmem_to_smem %s26, 16, [#allocation2], [#allocation4]
    $region17: #{seq2seq_trace_forward.1} parent=1 // pred_fallthru
      _
    // Predicated region
    $region18: #{seq2seq_trace_forward.1} parent=1 // pred_check
      _
    $region19: #{seq2seq_trace_forward.1} parent=1 // pred_check_branch
      %30 = sbr.rel (0) target = $region21
    $region20: #{seq2seq_trace_forward.1} parent=1 // pred_region
      %32 = vsyncadd [#allocation3], 0
      %s33 = sshll.u32 %s4, 4
      %s34 = int_to_ptr.hbm [resolvable:$true] %s33
      %s35 = sshll.u32 [#allocation5], 4
      %s36 = int_to_ptr.vmem [resolvable:$true] %s35
      %41 = dma.hbm_to_vmem [thread:$0]  %s34, 2048, %s36, [#allocation3], 128, 128, 8
    $region21: #{seq2seq_trace_forward.1} parent=1 // pred_fallthru
      _
    // Predicated region
    $region22: #{seq2seq_trace_forward.1} parent=1 // pred_check
      _
    $region23: #{seq2seq_trace_forward.1} parent=1 // pred_check_branch
      %43 = sbr.rel (0) target = $region25
    $region24: #{seq2seq_trace_forward.1} parent=1 // pred_region
      %45 = vsyncadd [#allocation7], 0
      %s46 = sshll.u32 %s5, 4
      %s47 = int_to_ptr.hbm [resolvable:$true] %s46
      %s48 = sshll.u32 [#allocation6], 4
      %s49 = int_to_ptr.vmem [resolvable:$true] %s48
      %54 = dma.hbm_to_vmem [thread:$0]  %s47, 2816, %s49, [#allocation7], 256, 256, 16
    $region25: #{seq2seq_trace_forward.1} parent=1 // pred_fallthru
      _
    // Predicated region
    $region26: #{seq2seq_trace_forward.1} parent=1 // pred_check
      _
    $region27: #{seq2seq_trace_forward.1} parent=1 // pred_check_branch
      %56 = sbr.rel (0) target = $region29
    $region28: #{seq2seq_trace_forward.1} parent=1 // pred_region
      %58 = dma.done [#allocation4], 16
    $region29: #{seq2seq_trace_forward.1} parent=1 // pred_fallthru
      _
    // Predicated region
    $region30: #{seq2seq_trace_forward.1} parent=1 // pred_check
      _
    $region31: #{seq2seq_trace_forward.1} parent=1 // pred_check_branch
      %60 = sbr.rel (0) target = $region33
    $region32: #{seq2seq_trace_forward.1} parent=1 // pred_region
      %62 = dma.done [#allocation3], 2048
    $region33: #{seq2seq_trace_forward.1} parent=1 // pred_fallthru
      _
    // Predicated region
    $region34: #{seq2seq_trace_forward.1} parent=1 // pred_check
      _
    $region35: #{seq2seq_trace_forward.1} parent=1 // pred_check_branch
      %64 = sbr.rel (0) target = $region37
    $region36: #{seq2seq_trace_forward.1} parent=1 // pred_region
      %66 = dma.done [#allocation7], 2816
    $region37: #{seq2seq_trace_forward.1} parent=1 // pred_fallthru
      _
    %67 = sfence
    %v68 = vld [vmem:[#allocation5] sm:$0xff]
    %v69 = vld [vmem:[#allocation5 + $0x8] sm:$0x3]
    %v70 = vld [vmem:[#allocation5 + $0x10] sm:$0xff]
    %v71 = vld [vmem:[#allocation5 + $0x18] sm:$0xff]
    %v72 = vld [vmem:[#allocation5 + $0x20] sm:$0xff]
    %v73 = vld [vmem:[#allocation5 + $0x28] sm:$0xff]
    %v74 = vld [vmem:[#allocation5 + $0x30] sm:$0x1]
    %v75 = vperm.slane %v74, 0
    %v76 = vld [vmem:[#allocation5 + $0x38] sm:$0xff]
    %v77 = vld [vmem:[#allocation5 + $0x40] sm:$0xff]
    %v78 = vld [vmem:[#allocation5 + $0x48] sm:$0xff]
    %v79 = vld [vmem:[#allocation5 + $0x50] sm:$0xff]
    %v80 = vld [vmem:[#allocation5 + $0x58] sm:$0xff]
    %v81 = vld [vmem:[#allocation5 + $0x60] sm:$0xff]
    %v82 = vld [vmem:[#allocation5 + $0x68] sm:$0xff]
    %v83 = vld [vmem:[#allocation5 + $0x70] sm:$0xff]
    %v84 = vld [vmem:[#allocation5 + $0x78] sm:$0x1]
    %v85 = vperm.slane %v84, 0
    %v86 = vld [vmem:[#allocation6] sm:$0xff]
    %v87 = vld [vmem:[#allocation6 + $0x8] sm:$0xff]
    %v88 = vld [vmem:[#allocation6 + $0x10] sm:$0xff]
    %v89 = vld [vmem:[#allocation6 + $0x18] sm:$0xff]
    %v90 = vld [vmem:[#allocation6 + $0x20] sm:$0xff]
    %v91 = vld [vmem:[#allocation6 + $0x28] sm:$0xff]
    %v92 = vld [vmem:[#allocation6 + $0x30] sm:$0xff]
    %v93 = vld [vmem:[#allocation6 + $0x38] sm:$0xff]
    %v94 = vld [vmem:[#allocation6 + $0x40] sm:$0xff]
    %v95 = vld [vmem:[#allocation6 + $0x48] sm:$0xff]
    %v96 = vld [vmem:[#allocation6 + $0x50] sm:$0xff]
    %v97 = vld [vmem:[#allocation6 + $0x58] sm:$0xff]
    %v98 = vld [vmem:[#allocation6 + $0x60] sm:$0xff]
    %v99 = vld [vmem:[#allocation6 + $0x68] sm:$0xff]
    %v100 = vld [vmem:[#allocation6 + $0x70] sm:$0xff]
    %v101 = vld [vmem:[#allocation6 + $0x78] sm:$0xff]
    %v102 = vld [vmem:[#allocation6 + $0x80] sm:$0xff]
    %v103 = vld [vmem:[#allocation6 + $0x88] sm:$0xff]
    %s104 = scalar_lea.vmem [#allocation6], 144
    %v105 = vld [vmem:[%s104] ss:$8 sm:$0x3]
    %v107 = vperm.slane %v105, 0
    %v108 = vperm.slane %v105, 1
    %s111 = scalar_lea.vmem [#allocation6], 160
    %v112 = vld [vmem:[%s111] ss:$8 sm:$0x3]
    %v114 = vperm.slane %v112, 0
    %v115 = vperm.slane %v112, 1
    %v118 = vld [vmem:[%s0] sm:$0x1]
    %v119 = vld [vmem:[%s0 + $0x8] sm:$0x1]
    %v120 = vld [vmem:[%s0 + $0x10] sm:$0x1]
    %v121 = vld [vmem:[%s0 + $0x18] sm:$0x1]
    %v126 = vrot.slane %v119, 7
    %vm127 = vcmask 1041409
    %v128 = vsel %vm127, %v126, %v118
    %v129 = vrot.slane %v120, 6
    %vm130 = vcmask 1042434
    %v131 = vsel %vm130, %v129, %v128
    %v132 = vrot.slane %v121, 5
    %vm133 = vcmask 1043459
    %v134 = vsel %vm133, %v132, %v131
    %vm135 = vcmask 80896
    %v136 = vsel %vm135, %v134, 0
    %vm138 = vcmask 1041408
    %v140 = vsel %vm138, %v69, 0
    %142 = vmatpush.msra.mxu0 0.0
    %143 = vmatpush.msra.mxu0 0.0
    %144 = vmatpush.msra.mxu0 0.0
    %145 = vmatpush.msra.mxu0 0.0
    %146 = vmatpush.msra.mxu0 0.0
    %147 = vmatpush.msra.mxu0 0.0
    %148 = vmatpush.msra.mxu0 0.0
    %149 = vmatpush.msra.mxu0 0.0
    %150 = vmatpush.msra.mxu0 0.0
    %151 = vmatpush.msra.mxu0 0.0
    %152 = vmatpush.msra.mxu0 0.0
    %153 = vmatpush.msra.mxu0 0.0
    %154 = vmatpush.msra.mxu0 0.0
    %155 = vmatpush.msra.mxu0 0.0
    %156 = vmatpush.msra.mxu0 %v140
    %157 = vmatpush.msra.mxu0 %v68
    %158 = vmatmul.f32.gmra.mxu0 %v136
    %v159 = vpop.f32.mrf.mxu0
    %v160 = vadd.f32 %v75, %v159
    %161 = vdwg.mxu0
    %v162 = vld [vmem:[%s0 + $0x1] sm:$0x1]
    %v163 = vld [vmem:[%s0 + $0x9] sm:$0x1]
    %v164 = vld [vmem:[%s0 + $0x11] sm:$0x1]
    %v165 = vld [vmem:[%s0 + $0x19] sm:$0x1]
    %v170 = vrot.slane %v163, 7
    %v171 = vsel %vm127, %v170, %v162
    %v172 = vrot.slane %v164, 6
    %v173 = vsel %vm130, %v172, %v171
    %v174 = vrot.slane %v165, 5
    %v175 = vsel %vm133, %v174, %v173
    %v176 = vsel %vm135, %v175, 0
    %178 = vmatpush.msra.mxu0 0.0
    %179 = vmatpush.msra.mxu0 0.0
    %180 = vmatpush.msra.mxu0 0.0
    %181 = vmatpush.msra.mxu0 0.0
    %182 = vmatpush.msra.mxu0 0.0
    %183 = vmatpush.msra.mxu0 0.0
    %184 = vmatpush.msra.mxu0 0.0
    %185 = vmatpush.msra.mxu0 0.0
    %186 = vmatpush.msra.mxu0 0.0
    %187 = vmatpush.msra.mxu0 0.0
    %188 = vmatpush.msra.mxu0 0.0
    %189 = vmatpush.msra.mxu0 0.0
    %190 = vmatpush.msra.mxu0 0.0
    %191 = vmatpush.msra.mxu0 0.0
    %192 = vmatpush.msra.mxu0 %v140
    %193 = vmatpush.msra.mxu0 %v68
    %194 = vmatmul.f32.gmra.mxu0 %v176
    %v195 = vpop.f32.mrf.mxu0
    %v196 = vadd.f32 %v75, %v195
    %197 = vdwg.mxu0
    %v198 = vld [vmem:[%s0 + $0x2] sm:$0x1]
    %v199 = vld [vmem:[%s0 + $0xa] sm:$0x1]
    %v200 = vld [vmem:[%s0 + $0x12] sm:$0x1]
    %v201 = vld [vmem:[%s0 + $0x1a] sm:$0x1]
    %v206 = vrot.slane %v199, 7
    %v207 = vsel %vm127, %v206, %v198
    %v208 = vrot.slane %v200, 6
    %v209 = vsel %vm130, %v208, %v207
    %v210 = vrot.slane %v201, 5
    %v211 = vsel %vm133, %v210, %v209
    %v212 = vsel %vm135, %v211, 0
    %214 = vmatpush.msra.mxu0 0.0
    %215 = vmatpush.msra.mxu0 0.0
    %216 = vmatpush.msra.mxu0 0.0
    %217 = vmatpush.msra.mxu0 0.0
    %218 = vmatpush.msra.mxu0 0.0
    %219 = vmatpush.msra.mxu0 0.0
    %220 = vmatpush.msra.mxu0 0.0
    %221 = vmatpush.msra.mxu0 0.0
    %222 = vmatpush.msra.mxu0 0.0
    %223 = vmatpush.msra.mxu0 0.0
    %224 = vmatpush.msra.mxu0 0.0
    %225 = vmatpush.msra.mxu0 0.0
    %226 = vmatpush.msra.mxu0 0.0
    %227 = vmatpush.msra.mxu0 0.0
    %228 = vmatpush.msra.mxu0 %v140
    %229 = vmatpush.msra.mxu0 %v68
    %230 = vmatmul.f32.gmra.mxu0 %v212
    %v231 = vpop.f32.mrf.mxu0
    %v232 = vadd.f32 %v75, %v231
    %233 = vdwg.mxu0
    %v234 = vld [vmem:[%s0 + $0x3] sm:$0x1]
    %v235 = vld [vmem:[%s0 + $0xb] sm:$0x1]
    %v236 = vld [vmem:[%s0 + $0x13] sm:$0x1]
    %v237 = vld [vmem:[%s0 + $0x1b] sm:$0x1]
    %v242 = vrot.slane %v235, 7
    %v243 = vsel %vm127, %v242, %v234
    %v244 = vrot.slane %v236, 6
    %v245 = vsel %vm130, %v244, %v243
    %v246 = vrot.slane %v237, 5
    %v247 = vsel %vm133, %v246, %v245
    %v248 = vsel %vm135, %v247, 0
    %250 = vmatpush.msra.mxu0 0.0
    %251 = vmatpush.msra.mxu0 0.0
    %252 = vmatpush.msra.mxu0 0.0
    %253 = vmatpush.msra.mxu0 0.0
    %254 = vmatpush.msra.mxu0 0.0
    %255 = vmatpush.msra.mxu0 0.0
    %256 = vmatpush.msra.mxu0 0.0
    %257 = vmatpush.msra.mxu0 0.0
    %258 = vmatpush.msra.mxu0 0.0
    %259 = vmatpush.msra.mxu0 0.0
    %260 = vmatpush.msra.mxu0 0.0
    %261 = vmatpush.msra.mxu0 0.0
    %262 = vmatpush.msra.mxu0 0.0
    %263 = vmatpush.msra.mxu0 0.0
    %264 = vmatpush.msra.mxu0 %v140
    %265 = vmatpush.msra.mxu0 %v68
    %266 = vmatmul.f32.gmra.mxu0 %v248
    %v267 = vpop.f32.mrf.mxu0
    %v268 = vadd.f32 %v75, %v267
    %269 = vdwg.mxu0
    %v270 = vld [vmem:[%s0 + $0x4] sm:$0x1]
    %v271 = vld [vmem:[%s0 + $0xc] sm:$0x1]
    %v272 = vld [vmem:[%s0 + $0x14] sm:$0x1]
    %v273 = vld [vmem:[%s0 + $0x1c] sm:$0x1]
    %v278 = vrot.slane %v271, 7
    %v279 = vsel %vm127, %v278, %v270
    %v280 = vrot.slane %v272, 6
    %v281 = vsel %vm130, %v280, %v279
    %v282 = vrot.slane %v273, 5
    %v283 = vsel %vm133, %v282, %v281
    %v284 = vsel %vm135, %v283, 0
    %286 = vmatpush.msra.mxu0 0.0
    %287 = vmatpush.msra.mxu0 0.0
    %288 = vmatpush.msra.mxu0 0.0
    %289 = vmatpush.msra.mxu0 0.0
    %290 = vmatpush.msra.mxu0 0.0
    %291 = vmatpush.msra.mxu0 0.0
    %292 = vmatpush.msra.mxu0 0.0
    %293 = vmatpush.msra.mxu0 0.0
    %294 = vmatpush.msra.mxu0 0.0
    %295 = vmatpush.msra.mxu0 0.0
    %296 = vmatpush.msra.mxu0 0.0
    %297 = vmatpush.msra.mxu0 0.0
    %298 = vmatpush.msra.mxu0 0.0
    %299 = vmatpush.msra.mxu0 0.0
    %300 = vmatpush.msra.mxu0 %v140
    %301 = vmatpush.msra.mxu0 %v68
    %302 = vmatmul.f32.gmra.mxu0 %v284
    %v303 = vpop.f32.mrf.mxu0
    %v304 = vadd.f32 %v75, %v303
    %305 = vdwg.mxu0
    %v306 = vld [vmem:[%s0 + $0x5] sm:$0x1]
    %v307 = vld [vmem:[%s0 + $0xd] sm:$0x1]
    %v308 = vld [vmem:[%s0 + $0x15] sm:$0x1]
    %v309 = vld [vmem:[%s0 + $0x1d] sm:$0x1]
    %v314 = vrot.slane %v307, 7
    %v315 = vsel %vm127, %v314, %v306
    %v316 = vrot.slane %v308, 6
    %v317 = vsel %vm130, %v316, %v315
    %v318 = vrot.slane %v309, 5
    %v319 = vsel %vm133, %v318, %v317
    %v320 = vsel %vm135, %v319, 0
    %322 = vmatpush.msra.mxu0 0.0
    %323 = vmatpush.msra.mxu0 0.0
    %324 = vmatpush.msra.mxu0 0.0
    %325 = vmatpush.msra.mxu0 0.0
    %326 = vmatpush.msra.mxu0 0.0
    %327 = vmatpush.msra.mxu0 0.0
    %328 = vmatpush.msra.mxu0 0.0
    %329 = vmatpush.msra.mxu0 0.0
    %330 = vmatpush.msra.mxu0 0.0
    %331 = vmatpush.msra.mxu0 0.0
    %332 = vmatpush.msra.mxu0 0.0
    %333 = vmatpush.msra.mxu0 0.0
    %334 = vmatpush.msra.mxu0 0.0
    %335 = vmatpush.msra.mxu0 0.0
    %336 = vmatpush.msra.mxu0 %v140
    %337 = vmatpush.msra.mxu0 %v68
    %338 = vmatmul.f32.gmra.mxu0 %v320
    %v339 = vpop.f32.mrf.mxu0
    %v340 = vadd.f32 %v75, %v339
    %341 = vdwg.mxu0
    %vm342 = vcmask 261120
    %v344 = vsel %vm342, 0.0, 0
    %346 = vmatpush.msra.mxu0 0.0
    %347 = vmatpush.msra.mxu0 0.0
    %348 = vmatpush.msra.mxu0 0.0
    %349 = vmatpush.msra.mxu0 0.0
    %350 = vmatpush.msra.mxu0 0.0
    %351 = vmatpush.msra.mxu0 0.0
    %352 = vmatpush.msra.mxu0 0.0
    %353 = vmatpush.msra.mxu0 0.0
    %354 = vmatpush.msra.mxu0 0.0
    %355 = vmatpush.msra.mxu0 0.0
    %356 = vmatpush.msra.mxu0 0.0
    %357 = vmatpush.msra.mxu0 0.0
    %358 = vmatpush.msra.mxu0 %v73
    %359 = vmatpush.msra.mxu0 %v72
    %360 = vmatpush.msra.mxu0 %v71
    %361 = vmatpush.msra.mxu0 %v70
    %362 = vmatmul.f32.gmra.mxu0 %v344
    %v363 = vpop.f32.mrf.mxu0
    %v364 = vadd.f32 0.0, %v363
    %365 = vdwg.mxu0
    %v366 = vadd.f32 %v160, %v364
    %v367 = vxor.u32 %v366, 2147483648
    %v368 = vmul.f32 %v367, 1.442695
    %v369 = vpow.pop %v368
    %v370 = vadd.f32 %v369, 1.0
    %v371 = vrcp.pop %v370
    %v372 = vmul.f32 %v370, %v371
    %v373 = vsub.f32 1.0, %v372
    %v374 = vmul.f32 %v371, %v373
    %v375 = vadd.f32 %v371, %v374
    %vm376 = vweird.f32 %v370
    %vm377 = vweird.f32 %v371
    %vm378 = vmor %vm376, %vm377
    %v379 = vsel %vm378, %v371, %v375
    %v380 = vand.u32 2147483647, %v370
    %vm381 = vcmp.eq.f32.partialorder %v380, 8.507059e+37
    %v382 = vand.u32 %v370, 2147483648
    %v383 = vor.u32 1.1754944e-38, %v382
    %v384 = vsel %vm381, %v383, %v379
    %v385 = vmul.f32 1.0, %v384
    %v386 = vtanh.pop %v366
    %v387 = vmul.f32 %v385, 0.0
    %389 = vrot.lane.b32.xlu0 %v386, 64
    %v390 = vpop.permute.xlu0 %389
    %v392 = vmul.f32 %v385, %v390
    %394 = vrot.lane.b32.xlu0 %v392, 32
    %v395 = vpop.permute.xlu0 %394
    %v397 = vadd.f32 %v387, %v395
    %v398 = vtanh.pop %v397
    %400 = vrot.lane.b32.xlu0 %v398, 64
    %v401 = vpop.permute.xlu0 %400
    %v403 = vmul.f32 %v385, %v401
    %405 = vrot.lane.b32.xlu0 %v403, 32
    %v406 = vpop.permute.xlu0 %405
    %v407 = vsel %vm342, %v406, 0
    %409 = vmatpush.msra.mxu0 0.0
    %410 = vmatpush.msra.mxu0 0.0
    %411 = vmatpush.msra.mxu0 0.0
    %412 = vmatpush.msra.mxu0 0.0
    %413 = vmatpush.msra.mxu0 0.0
    %414 = vmatpush.msra.mxu0 0.0
    %415 = vmatpush.msra.mxu0 0.0
    %416 = vmatpush.msra.mxu0 0.0
    %417 = vmatpush.msra.mxu0 0.0
    %418 = vmatpush.msra.mxu0 0.0
    %419 = vmatpush.msra.mxu0 0.0
    %420 = vmatpush.msra.mxu0 0.0
    %421 = vmatpush.msra.mxu0 %v73
    %422 = vmatpush.msra.mxu0 %v72
    %423 = vmatpush.msra.mxu0 %v71
    %424 = vmatpush.msra.mxu0 %v70
    %425 = vmatmul.f32.gmra.mxu0 %v407
    %v426 = vpop.f32.mrf.mxu0
    %v427 = vadd.f32 0.0, %v426
    %428 = vdwg.mxu0
    %v429 = vadd.f32 %v196, %v427
    %v430 = vxor.u32 %v429, 2147483648
    %v431 = vmul.f32 %v430, 1.442695
    %v432 = vpow.pop %v431
    %v433 = vadd.f32 %v432, 1.0
    %v434 = vrcp.pop %v433
    %v435 = vmul.f32 %v433, %v434
    %v436 = vsub.f32 1.0, %v435
    %v437 = vmul.f32 %v434, %v436
    %v438 = vadd.f32 %v434, %v437
    %vm439 = vweird.f32 %v433
    %vm440 = vweird.f32 %v434
    %vm441 = vmor %vm439, %vm440
    %v442 = vsel %vm441, %v434, %v438
    %v443 = vand.u32 2147483647, %v433
    %vm444 = vcmp.eq.f32.partialorder %v443, 8.507059e+37
    %v445 = vand.u32 %v433, 2147483648
    %v446 = vor.u32 1.1754944e-38, %v445
    %v447 = vsel %vm444, %v446, %v442
    %v448 = vmul.f32 1.0, %v447
    %v449 = vtanh.pop %v429
    %v450 = vmul.f32 %v448, %v397
    %452 = vrot.lane.b32.xlu0 %v449, 64
    %v453 = vpop.permute.xlu0 %452
    %v455 = vmul.f32 %v448, %v453
    %457 = vrot.lane.b32.xlu0 %v455, 32
    %v458 = vpop.permute.xlu0 %457
    %v460 = vadd.f32 %v450, %v458
    %v461 = vtanh.pop %v460
    %463 = vrot.lane.b32.xlu0 %v461, 64
    %v464 = vpop.permute.xlu0 %463
    %v466 = vmul.f32 %v448, %v464
    %468 = vrot.lane.b32.xlu0 %v466, 32
    %v469 = vpop.permute.xlu0 %468
    %v470 = vsel %vm342, %v469, 0
    %472 = vmatpush.msra.mxu0 0.0
    %473 = vmatpush.msra.mxu0 0.0
    %474 = vmatpush.msra.mxu0 0.0
    %475 = vmatpush.msra.mxu0 0.0
    %476 = vmatpush.msra.mxu0 0.0
    %477 = vmatpush.msra.mxu0 0.0
    %478 = vmatpush.msra.mxu0 0.0
    %479 = vmatpush.msra.mxu0 0.0
    %480 = vmatpush.msra.mxu0 0.0
    %481 = vmatpush.msra.mxu0 0.0
    %482 = vmatpush.msra.mxu0 0.0
    %483 = vmatpush.msra.mxu0 0.0
    %484 = vmatpush.msra.mxu0 %v73
    %485 = vmatpush.msra.mxu0 %v72
    %486 = vmatpush.msra.mxu0 %v71
    %487 = vmatpush.msra.mxu0 %v70
    %488 = vmatmul.f32.gmra.mxu0 %v470
    %v489 = vpop.f32.mrf.mxu0
    %v490 = vadd.f32 0.0, %v489
    %491 = vdwg.mxu0
    %v492 = vadd.f32 %v232, %v490
    %v493 = vxor.u32 %v492, 2147483648
    %v494 = vmul.f32 %v493, 1.442695
    %v495 = vpow.pop %v494
    %v496 = vadd.f32 %v495, 1.0
    %v497 = vrcp.pop %v496
    %v498 = vmul.f32 %v496, %v497
    %v499 = vsub.f32 1.0, %v498
    %v500 = vmul.f32 %v497, %v499
    %v501 = vadd.f32 %v497, %v500
    %vm502 = vweird.f32 %v496
    %vm503 = vweird.f32 %v497
    %vm504 = vmor %vm502, %vm503
    %v505 = vsel %vm504, %v497, %v501
    %v506 = vand.u32 2147483647, %v496
    %vm507 = vcmp.eq.f32.partialorder %v506, 8.507059e+37
    %v508 = vand.u32 %v496, 2147483648
    %v509 = vor.u32 1.1754944e-38, %v508
    %v510 = vsel %vm507, %v509, %v505
    %v511 = vmul.f32 1.0, %v510
    %v512 = vtanh.pop %v492
    %v513 = vmul.f32 %v511, %v460
    %515 = vrot.lane.b32.xlu0 %v512, 64
    %v516 = vpop.permute.xlu0 %515
    %v518 = vmul.f32 %v511, %v516
    %520 = vrot.lane.b32.xlu0 %v518, 32
    %v521 = vpop.permute.xlu0 %520
    %v523 = vadd.f32 %v513, %v521
    %v524 = vtanh.pop %v523
    %526 = vrot.lane.b32.xlu0 %v524, 64
    %v527 = vpop.permute.xlu0 %526
    %v529 = vmul.f32 %v511, %v527
    %531 = vrot.lane.b32.xlu0 %v529, 32
    %v532 = vpop.permute.xlu0 %531
    %v533 = vsel %vm342, %v532, 0
    %535 = vmatpush.msra.mxu0 0.0
    %536 = vmatpush.msra.mxu0 0.0
    %537 = vmatpush.msra.mxu0 0.0
    %538 = vmatpush.msra.mxu0 0.0
    %539 = vmatpush.msra.mxu0 0.0
    %540 = vmatpush.msra.mxu0 0.0
    %541 = vmatpush.msra.mxu0 0.0
    %542 = vmatpush.msra.mxu0 0.0
    %543 = vmatpush.msra.mxu0 0.0
    %544 = vmatpush.msra.mxu0 0.0
    %545 = vmatpush.msra.mxu0 0.0
    %546 = vmatpush.msra.mxu0 0.0
    %547 = vmatpush.msra.mxu0 %v73
    %548 = vmatpush.msra.mxu0 %v72
    %549 = vmatpush.msra.mxu0 %v71
    %550 = vmatpush.msra.mxu0 %v70
    %551 = vmatmul.f32.gmra.mxu0 %v533
    %v552 = vpop.f32.mrf.mxu0
    %v553 = vadd.f32 0.0, %v552
    %554 = vdwg.mxu0
    %v555 = vadd.f32 %v268, %v553
    %v556 = vxor.u32 %v555, 2147483648
    %v557 = vmul.f32 %v556, 1.442695
    %v558 = vpow.pop %v557
    %v559 = vadd.f32 %v558, 1.0
    %v560 = vrcp.pop %v559
    %v561 = vmul.f32 %v559, %v560
    %v562 = vsub.f32 1.0, %v561
    %v563 = vmul.f32 %v560, %v562
    %v564 = vadd.f32 %v560, %v563
    %vm565 = vweird.f32 %v559
    %vm566 = vweird.f32 %v560
    %vm567 = vmor %vm565, %vm566
    %v568 = vsel %vm567, %v560, %v564
    %v569 = vand.u32 2147483647, %v559
    %vm570 = vcmp.eq.f32.partialorder %v569, 8.507059e+37
    %v571 = vand.u32 %v559, 2147483648
    %v572 = vor.u32 1.1754944e-38, %v571
    %v573 = vsel %vm570, %v572, %v568
    %v574 = vmul.f32 1.0, %v573
    %v575 = vtanh.pop %v555
    %v576 = vmul.f32 %v574, %v523
    %578 = vrot.lane.b32.xlu0 %v575, 64
    %v579 = vpop.permute.xlu0 %578
    %v581 = vmul.f32 %v574, %v579
    %583 = vrot.lane.b32.xlu0 %v581, 32
    %v584 = vpop.permute.xlu0 %583
    %v586 = vadd.f32 %v576, %v584
    %v587 = vtanh.pop %v586
    %589 = vrot.lane.b32.xlu0 %v587, 64
    %v590 = vpop.permute.xlu0 %589
    %v592 = vmul.f32 %v574, %v590
    %594 = vrot.lane.b32.xlu0 %v592, 32
    %v595 = vpop.permute.xlu0 %594
    %v596 = vsel %vm342, %v595, 0
    %598 = vmatpush.msra.mxu0 0.0
    %599 = vmatpush.msra.mxu0 0.0
    %600 = vmatpush.msra.mxu0 0.0
    %601 = vmatpush.msra.mxu0 0.0
    %602 = vmatpush.msra.mxu0 0.0
    %603 = vmatpush.msra.mxu0 0.0
    %604 = vmatpush.msra.mxu0 0.0
    %605 = vmatpush.msra.mxu0 0.0
    %606 = vmatpush.msra.mxu0 0.0
    %607 = vmatpush.msra.mxu0 0.0
    %608 = vmatpush.msra.mxu0 0.0
    %609 = vmatpush.msra.mxu0 0.0
    %610 = vmatpush.msra.mxu0 %v73
    %611 = vmatpush.msra.mxu0 %v72
    %612 = vmatpush.msra.mxu0 %v71
    %613 = vmatpush.msra.mxu0 %v70
    %614 = vmatmul.f32.gmra.mxu0 %v596
    %v615 = vpop.f32.mrf.mxu0
    %v616 = vadd.f32 0.0, %v615
    %617 = vdwg.mxu0
    %v618 = vadd.f32 %v304, %v616
    %v619 = vxor.u32 %v618, 2147483648
    %v620 = vmul.f32 %v619, 1.442695
    %v621 = vpow.pop %v620
    %v622 = vadd.f32 %v621, 1.0
    %v623 = vrcp.pop %v622
    %v624 = vmul.f32 %v622, %v623
    %v625 = vsub.f32 1.0, %v624
    %v626 = vmul.f32 %v623, %v625
    %v627 = vadd.f32 %v623, %v626
    %vm628 = vweird.f32 %v622
    %vm629 = vweird.f32 %v623
    %vm630 = vmor %vm628, %vm629
    %v631 = vsel %vm630, %v623, %v627
    %v632 = vand.u32 2147483647, %v622
    %vm633 = vcmp.eq.f32.partialorder %v632, 8.507059e+37
    %v634 = vand.u32 %v622, 2147483648
    %v635 = vor.u32 1.1754944e-38, %v634
    %v636 = vsel %vm633, %v635, %v631
    %v637 = vmul.f32 1.0, %v636
    %v638 = vtanh.pop %v618
    %v639 = vmul.f32 %v637, %v586
    %641 = vrot.lane.b32.xlu0 %v638, 64
    %v642 = vpop.permute.xlu0 %641
    %v644 = vmul.f32 %v637, %v642
    %646 = vrot.lane.b32.xlu0 %v644, 32
    %v647 = vpop.permute.xlu0 %646
    %v649 = vadd.f32 %v639, %v647
    %v650 = vtanh.pop %v649
    %652 = vrot.lane.b32.xlu0 %v650, 64
    %v653 = vpop.permute.xlu0 %652
    %v655 = vmul.f32 %v637, %v653
    %657 = vrot.lane.b32.xlu0 %v655, 32
    %v658 = vpop.permute.xlu0 %657
    %v659 = vsel %vm342, %v658, 0
    %661 = vmatpush.msra.mxu0 0.0
    %662 = vmatpush.msra.mxu0 0.0
    %663 = vmatpush.msra.mxu0 0.0
    %664 = vmatpush.msra.mxu0 0.0
    %665 = vmatpush.msra.mxu0 0.0
    %666 = vmatpush.msra.mxu0 0.0
    %667 = vmatpush.msra.mxu0 0.0
    %668 = vmatpush.msra.mxu0 0.0
    %669 = vmatpush.msra.mxu0 0.0
    %670 = vmatpush.msra.mxu0 0.0
    %671 = vmatpush.msra.mxu0 0.0
    %672 = vmatpush.msra.mxu0 0.0
    %673 = vmatpush.msra.mxu0 %v73
    %674 = vmatpush.msra.mxu0 %v72
    %675 = vmatpush.msra.mxu0 %v71
    %676 = vmatpush.msra.mxu0 %v70
    %677 = vmatmul.f32.gmra.mxu0 %v659
    %v678 = vpop.f32.mrf.mxu0
    %v679 = vadd.f32 0.0, %v678
    %680 = vdwg.mxu0
    %v681 = vadd.f32 %v340, %v679
    %v682 = vxor.u32 %v681, 2147483648
    %v683 = vmul.f32 %v682, 1.442695
    %v684 = vpow.pop %v683
    %v685 = vadd.f32 %v684, 1.0
    %v686 = vrcp.pop %v685
    %v687 = vmul.f32 %v685, %v686
    %v688 = vsub.f32 1.0, %v687
    %v689 = vmul.f32 %v686, %v688
    %v690 = vadd.f32 %v686, %v689
    %vm691 = vweird.f32 %v685
    %vm692 = vweird.f32 %v686
    %vm693 = vmor %vm691, %vm692
    %v694 = vsel %vm693, %v686, %v690
    %v695 = vand.u32 2147483647, %v685
    %vm696 = vcmp.eq.f32.partialorder %v695, 8.507059e+37
    %v697 = vand.u32 %v685, 2147483648
    %v698 = vor.u32 1.1754944e-38, %v697
    %v699 = vsel %vm696, %v698, %v694
    %v700 = vmul.f32 1.0, %v699
    %v701 = vtanh.pop %v681
    %v702 = vmul.f32 %v700, %v649
    %704 = vrot.lane.b32.xlu0 %v701, 64
    %v705 = vpop.permute.xlu0 %704
    %v707 = vmul.f32 %v700, %v705
    %709 = vrot.lane.b32.xlu0 %v707, 32
    %v710 = vpop.permute.xlu0 %709
    %v712 = vadd.f32 %v702, %v710
    %v713 = vtanh.pop %v712
    %715 = vrot.lane.b32.xlu0 %v713, 64
    %v716 = vpop.permute.xlu0 %715
    %v718 = vmul.f32 %v700, %v716
    %720 = vrot.lane.b32.xlu0 %v718, 32
    %v721 = vpop.permute.xlu0 %720
    %723 = vrot.lane.b32.xlu0 %v718, 64
    %v724 = vpop.permute.xlu0 %723
    %v726 = vsel %vm342, %v721, %v724
    %728 = vrot.lane.b32.xlu0 %v712, 96
    %v729 = vpop.permute.xlu0 %728
    %v731 = vsel %vm342, %v729, %v712
    %v732 = vlaneseq
    %v733 = vand.u32 %v732, 127
    %vm734 = vcmask 64512
    %v735 = vsel %vm734, %v319, 0
    %737 = vmatpush.msra.mxu0 0.0
    %738 = vmatpush.msra.mxu0 0.0
    %739 = vmatpush.msra.mxu0 0.0
    %740 = vmatpush.msra.mxu0 0.0
    %741 = vmatpush.msra.mxu0 0.0
    %742 = vmatpush.msra.mxu0 0.0
    %743 = vmatpush.msra.mxu0 0.0
    %744 = vmatpush.msra.mxu0 0.0
    %745 = vmatpush.msra.mxu0 0.0
    %746 = vmatpush.msra.mxu0 0.0
    %747 = vmatpush.msra.mxu0 0.0
    %748 = vmatpush.msra.mxu0 0.0
    %749 = vmatpush.msra.mxu0 0.0
    %750 = vmatpush.msra.mxu0 0.0
    %751 = vmatpush.msra.mxu0 0.0
    %752 = vmatpush.msra.mxu0 %v102
    %753 = vmatmul.f32.gmra.mxu0 %v735
    %v754 = vpop.f32.mrf.mxu0
    %v755 = vadd.f32 0.0, %v754
    %756 = vdwg.mxu0
    %757 = vmatpush.msra.mxu0 0.0
    %758 = vmatpush.msra.mxu0 0.0
    %759 = vmatpush.msra.mxu0 0.0
    %760 = vmatpush.msra.mxu0 0.0
    %761 = vmatpush.msra.mxu0 0.0
    %762 = vmatpush.msra.mxu0 0.0
    %763 = vmatpush.msra.mxu0 0.0
    %764 = vmatpush.msra.mxu0 0.0
    %765 = vmatpush.msra.mxu0 0.0
    %766 = vmatpush.msra.mxu0 0.0
    %767 = vmatpush.msra.mxu0 0.0
    %768 = vmatpush.msra.mxu0 0.0
    %769 = vmatpush.msra.mxu0 0.0
    %770 = vmatpush.msra.mxu0 0.0
    %771 = vmatpush.msra.mxu0 0.0
    %772 = vmatpush.msra.mxu0 %v103
    %773 = vmatmul.f32.gmra.mxu0 %v735
    %v774 = vpop.f32.mrf.mxu0
    %v775 = vadd.f32 0.0, %v774
    %776 = vdwg.mxu0
    %vm777 = vcmask 523264
    %v779 = vsel %vm777, %v726, 0
    %781 = vmatpush.msra.mxu0 0.0
    %782 = vmatpush.msra.mxu0 0.0
    %783 = vmatpush.msra.mxu0 0.0
    %784 = vmatpush.msra.mxu0 0.0
    %785 = vmatpush.msra.mxu0 0.0
    %786 = vmatpush.msra.mxu0 0.0
    %787 = vmatpush.msra.mxu0 0.0
    %788 = vmatpush.msra.mxu0 0.0
    %789 = vmatpush.msra.mxu0 %v100
    %790 = vmatpush.msra.mxu0 %v98
    %791 = vmatpush.msra.mxu0 %v96
    %792 = vmatpush.msra.mxu0 %v94
    %793 = vmatpush.msra.mxu0 %v92
    %794 = vmatpush.msra.mxu0 %v90
    %795 = vmatpush.msra.mxu0 %v88
    %796 = vmatpush.msra.mxu0 %v86
    %797 = vmatmul.f32.gmra.mxu0 %v779
    %v798 = vpop.f32.mrf.mxu0
    %v799 = vadd.f32 %v755, %v798
    %800 = vdwg.mxu0
    %801 = vmatpush.msra.mxu0 0.0
    %802 = vmatpush.msra.mxu0 0.0
    %803 = vmatpush.msra.mxu0 0.0
    %804 = vmatpush.msra.mxu0 0.0
    %805 = vmatpush.msra.mxu0 0.0
    %806 = vmatpush.msra.mxu0 0.0
    %807 = vmatpush.msra.mxu0 0.0
    %808 = vmatpush.msra.mxu0 0.0
    %809 = vmatpush.msra.mxu0 %v101
    %810 = vmatpush.msra.mxu0 %v99
    %811 = vmatpush.msra.mxu0 %v97
    %812 = vmatpush.msra.mxu0 %v95
    %813 = vmatpush.msra.mxu0 %v93
    %814 = vmatpush.msra.mxu0 %v91
    %815 = vmatpush.msra.mxu0 %v89
    %816 = vmatpush.msra.mxu0 %v87
    %817 = vmatmul.f32.gmra.mxu0 %v779
    %v818 = vpop.f32.mrf.mxu0
    %v819 = vadd.f32 %v775, %v818
    %820 = vdwg.mxu0
    %821 = vset.pattern.permute.xlu0 9
    %822 = vperm.xlu0 %821, %v306
    %v823 = vpop.permute.xlu0 %822
    %825 = vset.pattern.permute.xlu0 9
    %826 = vperm.xlu0 %825, %v307
    %v827 = vpop.permute.xlu0 %826
    %829 = vset.pattern.permute.xlu0 9
    %830 = vperm.xlu0 %829, %v308
    %v831 = vpop.permute.xlu0 %830
    %833 = vset.pattern.permute.xlu0 9
    %834 = vperm.xlu0 %833, %v309
    %v835 = vpop.permute.xlu0 %834
    %v837 = vmul.f32 %v823, %v107
    %v838 = vmul.f32 %v823, %v108
    %v839 = vmul.f32 %v827, %v107
    %v840 = vmul.f32 %v827, %v108
    %v841 = vmul.f32 %v831, %v107
    %v842 = vmul.f32 %v831, %v108
    %v843 = vmul.f32 %v835, %v107
    %v844 = vmul.f32 %v835, %v108
    %v853 = vrot.slane %v839, 7
    %v854 = vsel %vm127, %v853, %v837
    %v855 = vrot.slane %v841, 6
    %v856 = vsel %vm130, %v855, %v854
    %v857 = vrot.slane %v843, 5
    %v858 = vsel %vm133, %v857, %v856
    %v859 = vrot.slane %v840, 7
    %v860 = vsel %vm127, %v859, %v838
    %v861 = vrot.slane %v842, 6
    %v862 = vsel %vm130, %v861, %v860
    %v863 = vrot.slane %v844, 5
    %v864 = vsel %vm133, %v863, %v862
    %v867 = vadd.f32 %v799, %v858
    %v868 = vadd.f32 %v819, %v864
    %v869 = vadd.f32 %v867, %v114
    %v870 = vadd.f32 %v868, %v115
    %v871 = vxor.u32 %v869, 2147483648
    %v872 = vxor.u32 %v870, 2147483648
    %v873 = vmul.f32 %v871, 1.442695
    %v874 = vpow.pop %v873
    %v875 = vmul.f32 %v872, 1.442695
    %v876 = vpow.pop %v875
    %v877 = vadd.f32 %v874, 1.0
    %v878 = vadd.f32 %v876, 1.0
    %v879 = vrcp.pop %v877
    %v880 = vmul.f32 %v877, %v879
    %v881 = vsub.f32 1.0, %v880
    %v882 = vmul.f32 %v879, %v881
    %v883 = vadd.f32 %v879, %v882
    %vm884 = vweird.f32 %v877
    %vm885 = vweird.f32 %v879
    %vm886 = vmor %vm884, %vm885
    %v887 = vsel %vm886, %v879, %v883
    %v888 = vand.u32 2147483647, %v877
    %vm889 = vcmp.eq.f32.partialorder %v888, 8.507059e+37
    %v890 = vand.u32 %v877, 2147483648
    %v891 = vor.u32 1.1754944e-38, %v890
    %v892 = vsel %vm889, %v891, %v887
    %v893 = vmul.f32 1.0, %v892
    %v894 = vrcp.pop %v878
    %v895 = vmul.f32 %v878, %v894
    %v896 = vsub.f32 1.0, %v895
    %v897 = vmul.f32 %v894, %v896
    %v898 = vadd.f32 %v894, %v897
    %vm899 = vweird.f32 %v878
    %vm900 = vweird.f32 %v894
    %vm901 = vmor %vm899, %vm900
    %v902 = vsel %vm901, %v894, %v898
    %v903 = vand.u32 2147483647, %v878
    %vm904 = vcmp.eq.f32.partialorder %v903, 8.507059e+37
    %v905 = vand.u32 %v878, 2147483648
    %v906 = vor.u32 1.1754944e-38, %v905
    %v907 = vsel %vm904, %v906, %v902
    %v908 = vmul.f32 1.0, %v907
    %v909 = vtanh.pop %v870
    %911 = vrot.lane.b32.xlu0 %v731, 64
    %v912 = vpop.permute.xlu0 %911
    %v914 = vmul.f32 %v893, %v912
    %916 = vrot.lane.b32.xlu0 %v909, 64
    %v917 = vpop.permute.xlu0 %916
    %v919 = vmul.f32 %v893, %v917
    %921 = vrot.lane.b32.xlu0 %v919, 64
    %v922 = vpop.permute.xlu0 %921
    %v924 = vadd.f32 %v914, %v922
    %v925 = vtanh.pop %v924
    %927 = vrot.lane.b32.xlu0 %v925, 64
    %v928 = vpop.permute.xlu0 %927
    %v930 = vmul.f32 %v908, %v928
    %v932 = vsel %vm777, %v930, 0
    %934 = vmatpush.msra.mxu0 0.0
    %935 = vmatpush.msra.mxu0 0.0
    %936 = vmatpush.msra.mxu0 0.0
    %937 = vmatpush.msra.mxu0 0.0
    %938 = vmatpush.msra.mxu0 0.0
    %939 = vmatpush.msra.mxu0 0.0
    %940 = vmatpush.msra.mxu0 0.0
    %941 = vmatpush.msra.mxu0 0.0
    %942 = vmatpush.msra.mxu0 %v83
    %943 = vmatpush.msra.mxu0 %v82
    %944 = vmatpush.msra.mxu0 %v81
    %945 = vmatpush.msra.mxu0 %v80
    %946 = vmatpush.msra.mxu0 %v79
    %947 = vmatpush.msra.mxu0 %v78
    %948 = vmatpush.msra.mxu0 %v77
    %949 = vmatpush.msra.mxu0 %v76
    %950 = vmatmul.f32.gmra.mxu0 %v932
    %v951 = vpop.f32.mrf.mxu0
    %v952 = vadd.f32 %v85, %v951
    %953 = vdwg.mxu0
    %v955 = vrot.slane %v952, 1
    %v956 = vrot.slane %v952, 2
    %v957 = vrot.slane %v952, 3
    %vm961 = vcmask 122880
    %962 = vst.msk [vmem:[%s6] sm:$0x1] %vm961, %v952
    %963 = vst.msk [vmem:[%s6 + $0x8] sm:$0x1] %vm961, %v955
    %964 = vst.msk [vmem:[%s6 + $0x10] sm:$0x1] %vm961, %v956
    %965 = vst.msk [vmem:[%s6 + $0x18] sm:$0x1] %vm961, %v957
    %v966 = vshra.s32 %v952, 31
    %v967 = vand.u32 %v966, 2147483647
    %v968 = vxor.u32 %v952, %v967
    %v969 = vand.u32 %v968, 4294967288
    %v970 = vsub.s32 7, %v733
    %v971 = vor.u32 %v969, %v970
    %vm972 = vcmask 60416
    %v973 = vsel %vm972, %v971, 2147483648
    %v974 = vand.u32 %v973, 65535
    %v975 = vshra.s32 %v973, 16
    %v976 = vcvt.s32.f32 %v974
    %v977 = vcvt.s32.f32 %v975
    %978 = vmax.xlane.f32.xlu0 %v977
    %v979 = vpop.xlane.xlu0 %978
    %vm980 = vcmp.eq.f32.partialorder %v977, %v979
    %v981 = vsel %vm980, %v976, -inf
    %982 = vmax.xlane.f32.xlu0 %v981
    %v983 = vpop.xlane.xlu0 %982
    %v984 = vcvt.f32.s32 %v983
    %v985 = vcvt.f32.s32 %v979
    %v986 = vshll.u32 %v985, 16
    %v987 = vadd.s32 %v986, %v984
    %vm988 = vcmp.eq.s32.totalorder %v971, %v987
    %vm989 = vcmp.ne.s32.totalorder %v733, 0
    %vm990 = vmand %vm988, %vm989
    %v991 = vsel %vm990, 1, 0
    %v992 = vcvt.s32.f32 %v991
    %v993 = vld [vmem:[%s1] sm:$0xf]
    %994 = vset.pattern.permute.xlu0 0
    %995 = vperm.xlu0 %994, %v993
    %v996 = vpop.permute.xlu0 %995
    %vm997 = vcmp.eq.s32.totalorder %v996, %v733
    %vm998 = vmand %vm997, %vm989
    %v999 = vsel %vm998, 1, 0
    %v1000 = vcvt.s32.f32 %v999
    %s1001 = sld [smem:[#allocation2]]
    %p1002 = scmp.gt.s32.totalorder %s1001, 0
    %s1003 = scalar_select %p1002, 1, 0
    %v1004 = vstv %s1003
    %vm1005 = vcmp.eq.s32.totalorder %v1004, 1
    %v1006 = vsel %vm1005, %v1000, %v992
    %s1007 = sld [smem:[#allocation2 + $0x5]]
    %p1008 = scmp.gt.s32.totalorder %s1007, 0
    %v1009 = vld [vmem:[%s2] sm:$0xf]
    %s1010 = scalar_select %p1008, 1, 0
    %v1011 = vstv %s1010
    %vm1012 = vcmp.eq.s32.totalorder %v1011, 1
    %1013 = vrot.lane.b32.xlu0 %v952, 120
    %v1014 = vpop.permute.xlu0 %1013
    %v1016 = vsel %vm1012, %v1009, %v1014
    %v1018 = vsel %vm734, %v1006, 0
    %1020 = vmatpush.msra.mxu0 0.0
    %1021 = vmatpush.msra.mxu0 0.0
    %1022 = vmatpush.msra.mxu0 0.0
    %1023 = vmatpush.msra.mxu0 0.0
    %1024 = vmatpush.msra.mxu0 0.0
    %1025 = vmatpush.msra.mxu0 0.0
    %1026 = vmatpush.msra.mxu0 0.0
    %1027 = vmatpush.msra.mxu0 0.0
    %1028 = vmatpush.msra.mxu0 0.0
    %1029 = vmatpush.msra.mxu0 0.0
    %1030 = vmatpush.msra.mxu0 0.0
    %1031 = vmatpush.msra.mxu0 0.0
    %1032 = vmatpush.msra.mxu0 0.0
    %1033 = vmatpush.msra.mxu0 0.0
    %1034 = vmatpush.msra.mxu0 0.0
    %1035 = vmatpush.msra.mxu0 %v102
    %1036 = vmatmul.f32.gmra.mxu0 %v1018
    %v1037 = vpop.f32.mrf.mxu0
    %v1038 = vadd.f32 0.0, %v1037
    %1039 = vdwg.mxu0
    %1040 = vmatpush.msra.mxu0 0.0
    %1041 = vmatpush.msra.mxu0 0.0
    %1042 = vmatpush.msra.mxu0 0.0
    %1043 = vmatpush.msra.mxu0 0.0
    %1044 = vmatpush.msra.mxu0 0.0
    %1045 = vmatpush.msra.mxu0 0.0
    %1046 = vmatpush.msra.mxu0 0.0
    %1047 = vmatpush.msra.mxu0 0.0
    %1048 = vmatpush.msra.mxu0 0.0
    %1049 = vmatpush.msra.mxu0 0.0
    %1050 = vmatpush.msra.mxu0 0.0
    %1051 = vmatpush.msra.mxu0 0.0
    %1052 = vmatpush.msra.mxu0 0.0
    %1053 = vmatpush.msra.mxu0 0.0
    %1054 = vmatpush.msra.mxu0 0.0
    %1055 = vmatpush.msra.mxu0 %v103
    %1056 = vmatmul.f32.gmra.mxu0 %v1018
    %v1057 = vpop.f32.mrf.mxu0
    %v1058 = vadd.f32 0.0, %v1057
    %1059 = vdwg.mxu0
    %1060 = vmatpush.msra.mxu0 0.0
    %1061 = vmatpush.msra.mxu0 0.0
    %1062 = vmatpush.msra.mxu0 0.0
    %1063 = vmatpush.msra.mxu0 0.0
    %1064 = vmatpush.msra.mxu0 0.0
    %1065 = vmatpush.msra.mxu0 0.0
    %1066 = vmatpush.msra.mxu0 0.0
    %1067 = vmatpush.msra.mxu0 0.0
    %1068 = vmatpush.msra.mxu0 %v100
    %1069 = vmatpush.msra.mxu0 %v98
    %1070 = vmatpush.msra.mxu0 %v96
    %1071 = vmatpush.msra.mxu0 %v94
    %1072 = vmatpush.msra.mxu0 %v92
    %1073 = vmatpush.msra.mxu0 %v90
    %1074 = vmatpush.msra.mxu0 %v88
    %1075 = vmatpush.msra.mxu0 %v86
    %1076 = vmatmul.f32.gmra.mxu0 %v932
    %v1077 = vpop.f32.mrf.mxu0
    %v1078 = vadd.f32 %v1038, %v1077
    %1079 = vdwg.mxu0
    %1080 = vmatpush.msra.mxu0 0.0
    %1081 = vmatpush.msra.mxu0 0.0
    %1082 = vmatpush.msra.mxu0 0.0
    %1083 = vmatpush.msra.mxu0 0.0
    %1084 = vmatpush.msra.mxu0 0.0
    %1085 = vmatpush.msra.mxu0 0.0
    %1086 = vmatpush.msra.mxu0 0.0
    %1087 = vmatpush.msra.mxu0 0.0
    %1088 = vmatpush.msra.mxu0 %v101
    %1089 = vmatpush.msra.mxu0 %v99
    %1090 = vmatpush.msra.mxu0 %v97
    %1091 = vmatpush.msra.mxu0 %v95
    %1092 = vmatpush.msra.mxu0 %v93
    %1093 = vmatpush.msra.mxu0 %v91
    %1094 = vmatpush.msra.mxu0 %v89
    %1095 = vmatpush.msra.mxu0 %v87
    %1096 = vmatmul.f32.gmra.mxu0 %v932
    %v1097 = vpop.f32.mrf.mxu0
    %v1098 = vadd.f32 %v1058, %v1097
    %1099 = vdwg.mxu0
    %1101 = vset.pattern.permute.xlu0 0
    %1102 = vperm.xlu0 %1101, %v1016
    %v1103 = vpop.permute.xlu0 %1102
    %v1105 = vmul.f32 %v1103, %v107
    %v1106 = vmul.f32 %v1103, %v108
    %v1107 = vadd.f32 %v1078, %v1105
    %v1108 = vadd.f32 %v1098, %v1106
    %v1109 = vadd.f32 %v1107, %v114
    %v1110 = vadd.f32 %v1108, %v115
    %v1111 = vxor.u32 %v1109, 2147483648
    %v1112 = vxor.u32 %v1110, 2147483648
    %v1113 = vmul.f32 %v1111, 1.442695
    %v1114 = vpow.pop %v1113
    %v1115 = vmul.f32 %v1112, 1.442695
    %v1116 = vpow.pop %v1115
    %v1117 = vadd.f32 %v1114, 1.0
    %v1118 = vadd.f32 %v1116, 1.0
    %v1119 = vrcp.pop %v1117
    %v1120 = vmul.f32 %v1117, %v1119
    %v1121 = vsub.f32 1.0, %v1120
    %v1122 = vmul.f32 %v1119, %v1121
    %v1123 = vadd.f32 %v1119, %v1122
    %vm1124 = vweird.f32 %v1117
    %vm1125 = vweird.f32 %v1119
    %vm1126 = vmor %vm1124, %vm1125
    %v1127 = vsel %vm1126, %v1119, %v1123
    %v1128 = vand.u32 2147483647, %v1117
    %vm1129 = vcmp.eq.f32.partialorder %v1128, 8.507059e+37
    %v1130 = vand.u32 %v1117, 2147483648
    %v1131 = vor.u32 1.1754944e-38, %v1130
    %v1132 = vsel %vm1129, %v1131, %v1127
    %v1133 = vmul.f32 1.0, %v1132
    %v1134 = vrcp.pop %v1118
    %v1135 = vmul.f32 %v1118, %v1134
    %v1136 = vsub.f32 1.0, %v1135
    %v1137 = vmul.f32 %v1134, %v1136
    %v1138 = vadd.f32 %v1134, %v1137
    %vm1139 = vweird.f32 %v1118
    %vm1140 = vweird.f32 %v1134
    %vm1141 = vmor %vm1139, %vm1140
    %v1142 = vsel %vm1141, %v1134, %v1138
    %v1143 = vand.u32 2147483647, %v1118
    %vm1144 = vcmp.eq.f32.partialorder %v1143, 8.507059e+37
    %v1145 = vand.u32 %v1118, 2147483648
    %v1146 = vor.u32 1.1754944e-38, %v1145
    %v1147 = vsel %vm1144, %v1146, %v1142
    %v1148 = vmul.f32 1.0, %v1147
    %v1149 = vtanh.pop %v1110
    %v1150 = vmul.f32 %v1133, %v924
    %1152 = vrot.lane.b32.xlu0 %v1149, 64
    %v1153 = vpop.permute.xlu0 %1152
    %v1155 = vmul.f32 %v1133, %v1153
    %1157 = vrot.lane.b32.xlu0 %v1155, 64
    %v1158 = vpop.permute.xlu0 %1157
    %v1160 = vadd.f32 %v1150, %v1158
    %v1161 = vtanh.pop %v1160
    %1163 = vrot.lane.b32.xlu0 %v1161, 64
    %v1164 = vpop.permute.xlu0 %1163
    %v1166 = vmul.f32 %v1148, %v1164
    %v1168 = vsel %vm777, %v1166, 0
    %1170 = vmatpush.msra.mxu0 0.0
    %1171 = vmatpush.msra.mxu0 0.0
    %1172 = vmatpush.msra.mxu0 0.0
    %1173 = vmatpush.msra.mxu0 0.0
    %1174 = vmatpush.msra.mxu0 0.0
    %1175 = vmatpush.msra.mxu0 0.0
    %1176 = vmatpush.msra.mxu0 0.0
    %1177 = vmatpush.msra.mxu0 0.0
    %1178 = vmatpush.msra.mxu0 %v83
    %1179 = vmatpush.msra.mxu0 %v82
    %1180 = vmatpush.msra.mxu0 %v81
    %1181 = vmatpush.msra.mxu0 %v80
    %1182 = vmatpush.msra.mxu0 %v79
    %1183 = vmatpush.msra.mxu0 %v78
    %1184 = vmatpush.msra.mxu0 %v77
    %1185 = vmatpush.msra.mxu0 %v76
    %1186 = vmatmul.f32.gmra.mxu0 %v1168
    %v1187 = vpop.f32.mrf.mxu0
    %v1188 = vadd.f32 %v85, %v1187
    %1189 = vdwg.mxu0
    %v1191 = vrot.slane %v1188, 1
    %v1192 = vrot.slane %v1188, 2
    %v1193 = vrot.slane %v1188, 3
    %1197 = vst.msk [vmem:[%s6 + $0x1] sm:$0x1] %vm961, %v1188
    %1198 = vst.msk [vmem:[%s6 + $0x9] sm:$0x1] %vm961, %v1191
    %1199 = vst.msk [vmem:[%s6 + $0x11] sm:$0x1] %vm961, %v1192
    %1200 = vst.msk [vmem:[%s6 + $0x19] sm:$0x1] %vm961, %v1193
    %v1201 = vshra.s32 %v1188, 31
    %v1202 = vand.u32 %v1201, 2147483647
    %v1203 = vxor.u32 %v1188, %v1202
    %v1204 = vand.u32 %v1203, 4294967288
    %v1205 = vor.u32 %v1204, %v970
    %v1206 = vsel %vm972, %v1205, 2147483648
    %v1207 = vand.u32 %v1206, 65535
    %v1208 = vshra.s32 %v1206, 16
    %v1209 = vcvt.s32.f32 %v1207
    %v1210 = vcvt.s32.f32 %v1208
    %1211 = vmax.xlane.f32.xlu0 %v1210
    %v1212 = vpop.xlane.xlu0 %1211
    %vm1213 = vcmp.eq.f32.partialorder %v1210, %v1212
    %v1214 = vsel %vm1213, %v1209, -inf
    %1215 = vmax.xlane.f32.xlu0 %v1214
    %v1216 = vpop.xlane.xlu0 %1215
    %v1217 = vcvt.f32.s32 %v1216
    %v1218 = vcvt.f32.s32 %v1212
    %v1219 = vshll.u32 %v1218, 16
    %v1220 = vadd.s32 %v1219, %v1217
    %vm1221 = vcmp.eq.s32.totalorder %v1205, %v1220
    %vm1222 = vmand %vm1221, %vm989
    %v1223 = vsel %vm1222, 1, 0
    %v1224 = vcvt.s32.f32 %v1223
    %v1225 = vld [vmem:[%s1] sm:$0xf]
    %1226 = vset.pattern.permute.xlu0 1
    %1227 = vperm.xlu0 %1226, %v1225
    %v1228 = vpop.permute.xlu0 %1227
    %vm1229 = vcmp.eq.s32.totalorder %v1228, %v733
    %vm1230 = vmand %vm1229, %vm989
    %v1231 = vsel %vm1230, 1, 0
    %v1232 = vcvt.s32.f32 %v1231
    %s1233 = sld [smem:[#allocation2 + $0x1]]
    %p1234 = scmp.gt.s32.totalorder %s1233, 0
    %s1235 = scalar_select %p1234, 1, 0
    %v1236 = vstv %s1235
    %vm1237 = vcmp.eq.s32.totalorder %v1236, 1
    %v1238 = vsel %vm1237, %v1232, %v1224
    %s1239 = sld [smem:[#allocation2 + $0x6]]
    %p1240 = scmp.gt.s32.totalorder %s1239, 0
    %v1241 = vld [vmem:[%s2] sm:$0xf]
    %s1242 = scalar_select %p1240, 1, 0
    %v1243 = vstv %s1242
    %vm1244 = vcmp.eq.s32.totalorder %v1243, 1
    %1245 = vrot.lane.b32.xlu0 %v1188, 121
    %v1246 = vpop.permute.xlu0 %1245
    %v1248 = vsel %vm1244, %v1241, %v1246
    %v1250 = vsel %vm734, %v1238, 0
    %1252 = vmatpush.msra.mxu0 0.0
    %1253 = vmatpush.msra.mxu0 0.0
    %1254 = vmatpush.msra.mxu0 0.0
    %1255 = vmatpush.msra.mxu0 0.0
    %1256 = vmatpush.msra.mxu0 0.0
    %1257 = vmatpush.msra.mxu0 0.0
    %1258 = vmatpush.msra.mxu0 0.0
    %1259 = vmatpush.msra.mxu0 0.0
    %1260 = vmatpush.msra.mxu0 0.0
    %1261 = vmatpush.msra.mxu0 0.0
    %1262 = vmatpush.msra.mxu0 0.0
    %1263 = vmatpush.msra.mxu0 0.0
    %1264 = vmatpush.msra.mxu0 0.0
    %1265 = vmatpush.msra.mxu0 0.0
    %1266 = vmatpush.msra.mxu0 0.0
    %1267 = vmatpush.msra.mxu0 %v102
    %1268 = vmatmul.f32.gmra.mxu0 %v1250
    %v1269 = vpop.f32.mrf.mxu0
    %v1270 = vadd.f32 0.0, %v1269
    %1271 = vdwg.mxu0
    %1272 = vmatpush.msra.mxu0 0.0
    %1273 = vmatpush.msra.mxu0 0.0
    %1274 = vmatpush.msra.mxu0 0.0
    %1275 = vmatpush.msra.mxu0 0.0
    %1276 = vmatpush.msra.mxu0 0.0
    %1277 = vmatpush.msra.mxu0 0.0
    %1278 = vmatpush.msra.mxu0 0.0
    %1279 = vmatpush.msra.mxu0 0.0
    %1280 = vmatpush.msra.mxu0 0.0
    %1281 = vmatpush.msra.mxu0 0.0
    %1282 = vmatpush.msra.mxu0 0.0
    %1283 = vmatpush.msra.mxu0 0.0
    %1284 = vmatpush.msra.mxu0 0.0
    %1285 = vmatpush.msra.mxu0 0.0
    %1286 = vmatpush.msra.mxu0 0.0
    %1287 = vmatpush.msra.mxu0 %v103
    %1288 = vmatmul.f32.gmra.mxu0 %v1250
    %v1289 = vpop.f32.mrf.mxu0
    %v1290 = vadd.f32 0.0, %v1289
    %1291 = vdwg.mxu0
    %1292 = vmatpush.msra.mxu0 0.0
    %1293 = vmatpush.msra.mxu0 0.0
    %1294 = vmatpush.msra.mxu0 0.0
    %1295 = vmatpush.msra.mxu0 0.0
    %1296 = vmatpush.msra.mxu0 0.0
    %1297 = vmatpush.msra.mxu0 0.0
    %1298 = vmatpush.msra.mxu0 0.0
    %1299 = vmatpush.msra.mxu0 0.0
    %1300 = vmatpush.msra.mxu0 %v100
    %1301 = vmatpush.msra.mxu0 %v98
    %1302 = vmatpush.msra.mxu0 %v96
    %1303 = vmatpush.msra.mxu0 %v94
    %1304 = vmatpush.msra.mxu0 %v92
    %1305 = vmatpush.msra.mxu0 %v90
    %1306 = vmatpush.msra.mxu0 %v88
    %1307 = vmatpush.msra.mxu0 %v86
    %1308 = vmatmul.f32.gmra.mxu0 %v1168
    %v1309 = vpop.f32.mrf.mxu0
    %v1310 = vadd.f32 %v1270, %v1309
    %1311 = vdwg.mxu0
    %1312 = vmatpush.msra.mxu0 0.0
    %1313 = vmatpush.msra.mxu0 0.0
    %1314 = vmatpush.msra.mxu0 0.0
    %1315 = vmatpush.msra.mxu0 0.0
    %1316 = vmatpush.msra.mxu0 0.0
    %1317 = vmatpush.msra.mxu0 0.0
    %1318 = vmatpush.msra.mxu0 0.0
    %1319 = vmatpush.msra.mxu0 0.0
    %1320 = vmatpush.msra.mxu0 %v101
    %1321 = vmatpush.msra.mxu0 %v99
    %1322 = vmatpush.msra.mxu0 %v97
    %1323 = vmatpush.msra.mxu0 %v95
    %1324 = vmatpush.msra.mxu0 %v93
    %1325 = vmatpush.msra.mxu0 %v91
    %1326 = vmatpush.msra.mxu0 %v89
    %1327 = vmatpush.msra.mxu0 %v87
    %1328 = vmatmul.f32.gmra.mxu0 %v1168
    %v1329 = vpop.f32.mrf.mxu0
    %v1330 = vadd.f32 %v1290, %v1329
    %1331 = vdwg.mxu0
    %1333 = vset.pattern.permute.xlu0 1
    %1334 = vperm.xlu0 %1333, %v1248
    %v1335 = vpop.permute.xlu0 %1334
    %v1337 = vmul.f32 %v1335, %v107
    %v1338 = vmul.f32 %v1335, %v108
    %v1339 = vadd.f32 %v1310, %v1337
    %v1340 = vadd.f32 %v1330, %v1338
    %v1341 = vadd.f32 %v1339, %v114
    %v1342 = vadd.f32 %v1340, %v115
    %v1343 = vxor.u32 %v1341, 2147483648
    %v1344 = vxor.u32 %v1342, 2147483648
    %v1345 = vmul.f32 %v1343, 1.442695
    %v1346 = vpow.pop %v1345
    %v1347 = vmul.f32 %v1344, 1.442695
    %v1348 = vpow.pop %v1347
    %v1349 = vadd.f32 %v1346, 1.0
    %v1350 = vadd.f32 %v1348, 1.0
    %v1351 = vrcp.pop %v1349
    %v1352 = vmul.f32 %v1349, %v1351
    %v1353 = vsub.f32 1.0, %v1352
    %v1354 = vmul.f32 %v1351, %v1353
    %v1355 = vadd.f32 %v1351, %v1354
    %vm1356 = vweird.f32 %v1349
    %vm1357 = vweird.f32 %v1351
    %vm1358 = vmor %vm1356, %vm1357
    %v1359 = vsel %vm1358, %v1351, %v1355
    %v1360 = vand.u32 2147483647, %v1349
    %vm1361 = vcmp.eq.f32.partialorder %v1360, 8.507059e+37
    %v1362 = vand.u32 %v1349, 2147483648
    %v1363 = vor.u32 1.1754944e-38, %v1362
    %v1364 = vsel %vm1361, %v1363, %v1359
    %v1365 = vmul.f32 1.0, %v1364
    %v1366 = vrcp.pop %v1350
    %v1367 = vmul.f32 %v1350, %v1366
    %v1368 = vsub.f32 1.0, %v1367
    %v1369 = vmul.f32 %v1366, %v1368
    %v1370 = vadd.f32 %v1366, %v1369
    %vm1371 = vweird.f32 %v1350
    %vm1372 = vweird.f32 %v1366
    %vm1373 = vmor %vm1371, %vm1372
    %v1374 = vsel %vm1373, %v1366, %v1370
    %v1375 = vand.u32 2147483647, %v1350
    %vm1376 = vcmp.eq.f32.partialorder %v1375, 8.507059e+37
    %v1377 = vand.u32 %v1350, 2147483648
    %v1378 = vor.u32 1.1754944e-38, %v1377
    %v1379 = vsel %vm1376, %v1378, %v1374
    %v1380 = vmul.f32 1.0, %v1379
    %v1381 = vtanh.pop %v1342
    %v1382 = vmul.f32 %v1365, %v1160
    %1384 = vrot.lane.b32.xlu0 %v1381, 64
    %v1385 = vpop.permute.xlu0 %1384
    %v1387 = vmul.f32 %v1365, %v1385
    %1389 = vrot.lane.b32.xlu0 %v1387, 64
    %v1390 = vpop.permute.xlu0 %1389
    %v1392 = vadd.f32 %v1382, %v1390
    %v1393 = vtanh.pop %v1392
    %1395 = vrot.lane.b32.xlu0 %v1393, 64
    %v1396 = vpop.permute.xlu0 %1395
    %v1398 = vmul.f32 %v1380, %v1396
    %v1400 = vsel %vm777, %v1398, 0
    %1402 = vmatpush.msra.mxu0 0.0
    %1403 = vmatpush.msra.mxu0 0.0
    %1404 = vmatpush.msra.mxu0 0.0
    %1405 = vmatpush.msra.mxu0 0.0
    %1406 = vmatpush.msra.mxu0 0.0
    %1407 = vmatpush.msra.mxu0 0.0
    %1408 = vmatpush.msra.mxu0 0.0
    %1409 = vmatpush.msra.mxu0 0.0
    %1410 = vmatpush.msra.mxu0 %v83
    %1411 = vmatpush.msra.mxu0 %v82
    %1412 = vmatpush.msra.mxu0 %v81
    %1413 = vmatpush.msra.mxu0 %v80
    %1414 = vmatpush.msra.mxu0 %v79
    %1415 = vmatpush.msra.mxu0 %v78
    %1416 = vmatpush.msra.mxu0 %v77
    %1417 = vmatpush.msra.mxu0 %v76
    %1418 = vmatmul.f32.gmra.mxu0 %v1400
    %v1419 = vpop.f32.mrf.mxu0
    %v1420 = vadd.f32 %v85, %v1419
    %1421 = vdwg.mxu0
    %v1423 = vrot.slane %v1420, 1
    %v1424 = vrot.slane %v1420, 2
    %v1425 = vrot.slane %v1420, 3
    %1429 = vst.msk [vmem:[%s6 + $0x2] sm:$0x1] %vm961, %v1420
    %1430 = vst.msk [vmem:[%s6 + $0xa] sm:$0x1] %vm961, %v1423
    %1431 = vst.msk [vmem:[%s6 + $0x12] sm:$0x1] %vm961, %v1424
    %1432 = vst.msk [vmem:[%s6 + $0x1a] sm:$0x1] %vm961, %v1425
    %v1433 = vshra.s32 %v1420, 31
    %v1434 = vand.u32 %v1433, 2147483647
    %v1435 = vxor.u32 %v1420, %v1434
    %v1436 = vand.u32 %v1435, 4294967288
    %v1437 = vor.u32 %v1436, %v970
    %v1438 = vsel %vm972, %v1437, 2147483648
    %v1439 = vand.u32 %v1438, 65535
    %v1440 = vshra.s32 %v1438, 16
    %v1441 = vcvt.s32.f32 %v1439
    %v1442 = vcvt.s32.f32 %v1440
    %1443 = vmax.xlane.f32.xlu0 %v1442
    %v1444 = vpop.xlane.xlu0 %1443
    %vm1445 = vcmp.eq.f32.partialorder %v1442, %v1444
    %v1446 = vsel %vm1445, %v1441, -inf
    %1447 = vmax.xlane.f32.xlu0 %v1446
    %v1448 = vpop.xlane.xlu0 %1447
    %v1449 = vcvt.f32.s32 %v1448
    %v1450 = vcvt.f32.s32 %v1444
    %v1451 = vshll.u32 %v1450, 16
    %v1452 = vadd.s32 %v1451, %v1449
    %vm1453 = vcmp.eq.s32.totalorder %v1437, %v1452
    %vm1454 = vmand %vm1453, %vm989
    %v1455 = vsel %vm1454, 1, 0
    %v1456 = vcvt.s32.f32 %v1455
    %v1457 = vld [vmem:[%s1] sm:$0xf]
    %1458 = vset.pattern.permute.xlu0 2
    %1459 = vperm.xlu0 %1458, %v1457
    %v1460 = vpop.permute.xlu0 %1459
    %vm1461 = vcmp.eq.s32.totalorder %v1460, %v733
    %vm1462 = vmand %vm1461, %vm989
    %v1463 = vsel %vm1462, 1, 0
    %v1464 = vcvt.s32.f32 %v1463
    %s1465 = sld [smem:[#allocation2 + $0x2]]
    %p1466 = scmp.gt.s32.totalorder %s1465, 0
    %s1467 = scalar_select %p1466, 1, 0
    %v1468 = vstv %s1467
    %vm1469 = vcmp.eq.s32.totalorder %v1468, 1
    %v1470 = vsel %vm1469, %v1464, %v1456
    %s1471 = sld [smem:[#allocation2 + $0x7]]
    %p1472 = scmp.gt.s32.totalorder %s1471, 0
    %v1473 = vld [vmem:[%s2] sm:$0xf]
    %s1474 = scalar_select %p1472, 1, 0
    %v1475 = vstv %s1474
    %vm1476 = vcmp.eq.s32.totalorder %v1475, 1
    %1477 = vrot.lane.b32.xlu0 %v1420, 122
    %v1478 = vpop.permute.xlu0 %1477
    %v1480 = vsel %vm1476, %v1473, %v1478
    %v1482 = vsel %vm734, %v1470, 0
    %1484 = vmatpush.msra.mxu0 0.0
    %1485 = vmatpush.msra.mxu0 0.0
    %1486 = vmatpush.msra.mxu0 0.0
    %1487 = vmatpush.msra.mxu0 0.0
    %1488 = vmatpush.msra.mxu0 0.0
    %1489 = vmatpush.msra.mxu0 0.0
    %1490 = vmatpush.msra.mxu0 0.0
    %1491 = vmatpush.msra.mxu0 0.0
    %1492 = vmatpush.msra.mxu0 0.0
    %1493 = vmatpush.msra.mxu0 0.0
    %1494 = vmatpush.msra.mxu0 0.0
    %1495 = vmatpush.msra.mxu0 0.0
    %1496 = vmatpush.msra.mxu0 0.0
    %1497 = vmatpush.msra.mxu0 0.0
    %1498 = vmatpush.msra.mxu0 0.0
    %1499 = vmatpush.msra.mxu0 %v102
    %1500 = vmatmul.f32.gmra.mxu0 %v1482
    %v1501 = vpop.f32.mrf.mxu0
    %v1502 = vadd.f32 0.0, %v1501
    %1503 = vdwg.mxu0
    %1504 = vmatpush.msra.mxu0 0.0
    %1505 = vmatpush.msra.mxu0 0.0
    %1506 = vmatpush.msra.mxu0 0.0
    %1507 = vmatpush.msra.mxu0 0.0
    %1508 = vmatpush.msra.mxu0 0.0
    %1509 = vmatpush.msra.mxu0 0.0
    %1510 = vmatpush.msra.mxu0 0.0
    %1511 = vmatpush.msra.mxu0 0.0
    %1512 = vmatpush.msra.mxu0 0.0
    %1513 = vmatpush.msra.mxu0 0.0
    %1514 = vmatpush.msra.mxu0 0.0
    %1515 = vmatpush.msra.mxu0 0.0
    %1516 = vmatpush.msra.mxu0 0.0
    %1517 = vmatpush.msra.mxu0 0.0
    %1518 = vmatpush.msra.mxu0 0.0
    %1519 = vmatpush.msra.mxu0 %v103
    %1520 = vmatmul.f32.gmra.mxu0 %v1482
    %v1521 = vpop.f32.mrf.mxu0
    %v1522 = vadd.f32 0.0, %v1521
    %1523 = vdwg.mxu0
    %1524 = vmatpush.msra.mxu0 0.0
    %1525 = vmatpush.msra.mxu0 0.0
    %1526 = vmatpush.msra.mxu0 0.0
    %1527 = vmatpush.msra.mxu0 0.0
    %1528 = vmatpush.msra.mxu0 0.0
    %1529 = vmatpush.msra.mxu0 0.0
    %1530 = vmatpush.msra.mxu0 0.0
    %1531 = vmatpush.msra.mxu0 0.0
    %1532 = vmatpush.msra.mxu0 %v100
    %1533 = vmatpush.msra.mxu0 %v98
    %1534 = vmatpush.msra.mxu0 %v96
    %1535 = vmatpush.msra.mxu0 %v94
    %1536 = vmatpush.msra.mxu0 %v92
    %1537 = vmatpush.msra.mxu0 %v90
    %1538 = vmatpush.msra.mxu0 %v88
    %1539 = vmatpush.msra.mxu0 %v86
    %1540 = vmatmul.f32.gmra.mxu0 %v1400
    %v1541 = vpop.f32.mrf.mxu0
    %v1542 = vadd.f32 %v1502, %v1541
    %1543 = vdwg.mxu0
    %1544 = vmatpush.msra.mxu0 0.0
    %1545 = vmatpush.msra.mxu0 0.0
    %1546 = vmatpush.msra.mxu0 0.0
    %1547 = vmatpush.msra.mxu0 0.0
    %1548 = vmatpush.msra.mxu0 0.0
    %1549 = vmatpush.msra.mxu0 0.0
    %1550 = vmatpush.msra.mxu0 0.0
    %1551 = vmatpush.msra.mxu0 0.0
    %1552 = vmatpush.msra.mxu0 %v101
    %1553 = vmatpush.msra.mxu0 %v99
    %1554 = vmatpush.msra.mxu0 %v97
    %1555 = vmatpush.msra.mxu0 %v95
    %1556 = vmatpush.msra.mxu0 %v93
    %1557 = vmatpush.msra.mxu0 %v91
    %1558 = vmatpush.msra.mxu0 %v89
    %1559 = vmatpush.msra.mxu0 %v87
    %1560 = vmatmul.f32.gmra.mxu0 %v1400
    %v1561 = vpop.f32.mrf.mxu0
    %v1562 = vadd.f32 %v1522, %v1561
    %1563 = vdwg.mxu0
    %1565 = vset.pattern.permute.xlu0 2
    %1566 = vperm.xlu0 %1565, %v1480
    %v1567 = vpop.permute.xlu0 %1566
    %v1569 = vmul.f32 %v1567, %v107
    %v1570 = vmul.f32 %v1567, %v108
    %v1571 = vadd.f32 %v1542, %v1569
    %v1572 = vadd.f32 %v1562, %v1570
    %v1573 = vadd.f32 %v1571, %v114
    %v1574 = vadd.f32 %v1572, %v115
    %v1575 = vxor.u32 %v1573, 2147483648
    %v1576 = vxor.u32 %v1574, 2147483648
    %v1577 = vmul.f32 %v1575, 1.442695
    %v1578 = vpow.pop %v1577
    %v1579 = vmul.f32 %v1576, 1.442695
    %v1580 = vpow.pop %v1579
    %v1581 = vadd.f32 %v1578, 1.0
    %v1582 = vadd.f32 %v1580, 1.0
    %v1583 = vrcp.pop %v1581
    %v1584 = vmul.f32 %v1581, %v1583
    %v1585 = vsub.f32 1.0, %v1584
    %v1586 = vmul.f32 %v1583, %v1585
    %v1587 = vadd.f32 %v1583, %v1586
    %vm1588 = vweird.f32 %v1581
    %vm1589 = vweird.f32 %v1583
    %vm1590 = vmor %vm1588, %vm1589
    %v1591 = vsel %vm1590, %v1583, %v1587
    %v1592 = vand.u32 2147483647, %v1581
    %vm1593 = vcmp.eq.f32.partialorder %v1592, 8.507059e+37
    %v1594 = vand.u32 %v1581, 2147483648
    %v1595 = vor.u32 1.1754944e-38, %v1594
    %v1596 = vsel %vm1593, %v1595, %v1591
    %v1597 = vmul.f32 1.0, %v1596
    %v1598 = vrcp.pop %v1582
    %v1599 = vmul.f32 %v1582, %v1598
    %v1600 = vsub.f32 1.0, %v1599
    %v1601 = vmul.f32 %v1598, %v1600
    %v1602 = vadd.f32 %v1598, %v1601
    %vm1603 = vweird.f32 %v1582
    %vm1604 = vweird.f32 %v1598
    %vm1605 = vmor %vm1603, %vm1604
    %v1606 = vsel %vm1605, %v1598, %v1602
    %v1607 = vand.u32 2147483647, %v1582
    %vm1608 = vcmp.eq.f32.partialorder %v1607, 8.507059e+37
    %v1609 = vand.u32 %v1582, 2147483648
    %v1610 = vor.u32 1.1754944e-38, %v1609
    %v1611 = vsel %vm1608, %v1610, %v1606
    %v1612 = vmul.f32 1.0, %v1611
    %v1613 = vtanh.pop %v1574
    %v1614 = vmul.f32 %v1597, %v1392
    %1616 = vrot.lane.b32.xlu0 %v1613, 64
    %v1617 = vpop.permute.xlu0 %1616
    %v1619 = vmul.f32 %v1597, %v1617
    %1621 = vrot.lane.b32.xlu0 %v1619, 64
    %v1622 = vpop.permute.xlu0 %1621
    %v1624 = vadd.f32 %v1614, %v1622
    %v1625 = vtanh.pop %v1624
    %1627 = vrot.lane.b32.xlu0 %v1625, 64
    %v1628 = vpop.permute.xlu0 %1627
    %v1630 = vmul.f32 %v1612, %v1628
    %v1632 = vsel %vm777, %v1630, 0
    %1634 = vmatpush.msra.mxu0 0.0
    %1635 = vmatpush.msra.mxu0 0.0
    %1636 = vmatpush.msra.mxu0 0.0
    %1637 = vmatpush.msra.mxu0 0.0
    %1638 = vmatpush.msra.mxu0 0.0
    %1639 = vmatpush.msra.mxu0 0.0
    %1640 = vmatpush.msra.mxu0 0.0
    %1641 = vmatpush.msra.mxu0 0.0
    %1642 = vmatpush.msra.mxu0 %v83
    %1643 = vmatpush.msra.mxu0 %v82
    %1644 = vmatpush.msra.mxu0 %v81
    %1645 = vmatpush.msra.mxu0 %v80
    %1646 = vmatpush.msra.mxu0 %v79
    %1647 = vmatpush.msra.mxu0 %v78
    %1648 = vmatpush.msra.mxu0 %v77
    %1649 = vmatpush.msra.mxu0 %v76
    %1650 = vmatmul.f32.gmra.mxu0 %v1632
    %v1651 = vpop.f32.mrf.mxu0
    %v1652 = vadd.f32 %v85, %v1651
    %1653 = vdwg.mxu0
    %v1655 = vrot.slane %v1652, 1
    %v1656 = vrot.slane %v1652, 2
    %v1657 = vrot.slane %v1652, 3
    %1661 = vst.msk [vmem:[%s6 + $0x3] sm:$0x1] %vm961, %v1652
    %1662 = vst.msk [vmem:[%s6 + $0xb] sm:$0x1] %vm961, %v1655
    %1663 = vst.msk [vmem:[%s6 + $0x13] sm:$0x1] %vm961, %v1656
    %1664 = vst.msk [vmem:[%s6 + $0x1b] sm:$0x1] %vm961, %v1657
    %v1665 = vshra.s32 %v1652, 31
    %v1666 = vand.u32 %v1665, 2147483647
    %v1667 = vxor.u32 %v1652, %v1666
    %v1668 = vand.u32 %v1667, 4294967288
    %v1669 = vor.u32 %v1668, %v970
    %v1670 = vsel %vm972, %v1669, 2147483648
    %v1671 = vand.u32 %v1670, 65535
    %v1672 = vshra.s32 %v1670, 16
    %v1673 = vcvt.s32.f32 %v1671
    %v1674 = vcvt.s32.f32 %v1672
    %1675 = vmax.xlane.f32.xlu0 %v1674
    %v1676 = vpop.xlane.xlu0 %1675
    %vm1677 = vcmp.eq.f32.partialorder %v1674, %v1676
    %v1678 = vsel %vm1677, %v1673, -inf
    %1679 = vmax.xlane.f32.xlu0 %v1678
    %v1680 = vpop.xlane.xlu0 %1679
    %v1681 = vcvt.f32.s32 %v1680
    %v1682 = vcvt.f32.s32 %v1676
    %v1683 = vshll.u32 %v1682, 16
    %v1684 = vadd.s32 %v1683, %v1681
    %vm1685 = vcmp.eq.s32.totalorder %v1669, %v1684
    %vm1686 = vmand %vm1685, %vm989
    %v1687 = vsel %vm1686, 1, 0
    %v1688 = vcvt.s32.f32 %v1687
    %v1689 = vld [vmem:[%s1] sm:$0xf]
    %1690 = vset.pattern.permute.xlu0 3
    %1691 = vperm.xlu0 %1690, %v1689
    %v1692 = vpop.permute.xlu0 %1691
    %vm1693 = vcmp.eq.s32.totalorder %v1692, %v733
    %vm1694 = vmand %vm1693, %vm989
    %v1695 = vsel %vm1694, 1, 0
    %v1696 = vcvt.s32.f32 %v1695
    %s1697 = sld [smem:[#allocation2 + $0x3]]
    %p1698 = scmp.gt.s32.totalorder %s1697, 0
    %s1699 = scalar_select %p1698, 1, 0
    %v1700 = vstv %s1699
    %vm1701 = vcmp.eq.s32.totalorder %v1700, 1
    %v1702 = vsel %vm1701, %v1696, %v1688
    %s1703 = sld [smem:[#allocation2 + $0x8]]
    %p1704 = scmp.gt.s32.totalorder %s1703, 0
    %v1705 = vld [vmem:[%s2] sm:$0xf]
    %s1706 = scalar_select %p1704, 1, 0
    %v1707 = vstv %s1706
    %vm1708 = vcmp.eq.s32.totalorder %v1707, 1
    %1709 = vrot.lane.b32.xlu0 %v1652, 123
    %v1710 = vpop.permute.xlu0 %1709
    %v1712 = vsel %vm1708, %v1705, %v1710
    %v1714 = vsel %vm734, %v1702, 0
    %1716 = vmatpush.msra.mxu0 0.0
    %1717 = vmatpush.msra.mxu0 0.0
    %1718 = vmatpush.msra.mxu0 0.0
    %1719 = vmatpush.msra.mxu0 0.0
    %1720 = vmatpush.msra.mxu0 0.0
    %1721 = vmatpush.msra.mxu0 0.0
    %1722 = vmatpush.msra.mxu0 0.0
    %1723 = vmatpush.msra.mxu0 0.0
    %1724 = vmatpush.msra.mxu0 0.0
    %1725 = vmatpush.msra.mxu0 0.0
    %1726 = vmatpush.msra.mxu0 0.0
    %1727 = vmatpush.msra.mxu0 0.0
    %1728 = vmatpush.msra.mxu0 0.0
    %1729 = vmatpush.msra.mxu0 0.0
    %1730 = vmatpush.msra.mxu0 0.0
    %1731 = vmatpush.msra.mxu0 %v102
    %1732 = vmatmul.f32.gmra.mxu0 %v1714
    %v1733 = vpop.f32.mrf.mxu0
    %v1734 = vadd.f32 0.0, %v1733
    %1735 = vdwg.mxu0
    %1736 = vmatpush.msra.mxu0 0.0
    %1737 = vmatpush.msra.mxu0 0.0
    %1738 = vmatpush.msra.mxu0 0.0
    %1739 = vmatpush.msra.mxu0 0.0
    %1740 = vmatpush.msra.mxu0 0.0
    %1741 = vmatpush.msra.mxu0 0.0
    %1742 = vmatpush.msra.mxu0 0.0
    %1743 = vmatpush.msra.mxu0 0.0
    %1744 = vmatpush.msra.mxu0 0.0
    %1745 = vmatpush.msra.mxu0 0.0
    %1746 = vmatpush.msra.mxu0 0.0
    %1747 = vmatpush.msra.mxu0 0.0
    %1748 = vmatpush.msra.mxu0 0.0
    %1749 = vmatpush.msra.mxu0 0.0
    %1750 = vmatpush.msra.mxu0 0.0
    %1751 = vmatpush.msra.mxu0 %v103
    %1752 = vmatmul.f32.gmra.mxu0 %v1714
    %v1753 = vpop.f32.mrf.mxu0
    %v1754 = vadd.f32 0.0, %v1753
    %1755 = vdwg.mxu0
    %1756 = vmatpush.msra.mxu0 0.0
    %1757 = vmatpush.msra.mxu0 0.0
    %1758 = vmatpush.msra.mxu0 0.0
    %1759 = vmatpush.msra.mxu0 0.0
    %1760 = vmatpush.msra.mxu0 0.0
    %1761 = vmatpush.msra.mxu0 0.0
    %1762 = vmatpush.msra.mxu0 0.0
    %1763 = vmatpush.msra.mxu0 0.0
    %1764 = vmatpush.msra.mxu0 %v100
    %1765 = vmatpush.msra.mxu0 %v98
    %1766 = vmatpush.msra.mxu0 %v96
    %1767 = vmatpush.msra.mxu0 %v94
    %1768 = vmatpush.msra.mxu0 %v92
    %1769 = vmatpush.msra.mxu0 %v90
    %1770 = vmatpush.msra.mxu0 %v88
    %1771 = vmatpush.msra.mxu0 %v86
    %1772 = vmatmul.f32.gmra.mxu0 %v1632
    %v1773 = vpop.f32.mrf.mxu0
    %v1774 = vadd.f32 %v1734, %v1773
    %1775 = vdwg.mxu0
    %1776 = vmatpush.msra.mxu0 0.0
    %1777 = vmatpush.msra.mxu0 0.0
    %1778 = vmatpush.msra.mxu0 0.0
    %1779 = vmatpush.msra.mxu0 0.0
    %1780 = vmatpush.msra.mxu0 0.0
    %1781 = vmatpush.msra.mxu0 0.0
    %1782 = vmatpush.msra.mxu0 0.0
    %1783 = vmatpush.msra.mxu0 0.0
    %1784 = vmatpush.msra.mxu0 %v101
    %1785 = vmatpush.msra.mxu0 %v99
    %1786 = vmatpush.msra.mxu0 %v97
    %1787 = vmatpush.msra.mxu0 %v95
    %1788 = vmatpush.msra.mxu0 %v93
    %1789 = vmatpush.msra.mxu0 %v91
    %1790 = vmatpush.msra.mxu0 %v89
    %1791 = vmatpush.msra.mxu0 %v87
    %1792 = vmatmul.f32.gmra.mxu0 %v1632
    %v1793 = vpop.f32.mrf.mxu0
    %v1794 = vadd.f32 %v1754, %v1793
    %1795 = vdwg.mxu0
    %1797 = vset.pattern.permute.xlu0 3
    %1798 = vperm.xlu0 %1797, %v1712
    %v1799 = vpop.permute.xlu0 %1798
    %v1801 = vmul.f32 %v1799, %v107
    %v1802 = vmul.f32 %v1799, %v108
    %v1803 = vadd.f32 %v1774, %v1801
    %v1804 = vadd.f32 %v1794, %v1802
    %v1805 = vadd.f32 %v1803, %v114
    %v1806 = vadd.f32 %v1804, %v115
    %v1807 = vxor.u32 %v1805, 2147483648
    %v1808 = vxor.u32 %v1806, 2147483648
    %v1809 = vmul.f32 %v1807, 1.442695
    %v1810 = vpow.pop %v1809
    %v1811 = vmul.f32 %v1808, 1.442695
    %v1812 = vpow.pop %v1811
    %v1813 = vadd.f32 %v1810, 1.0
    %v1814 = vadd.f32 %v1812, 1.0
    %v1815 = vrcp.pop %v1813
    %v1816 = vmul.f32 %v1813, %v1815
    %v1817 = vsub.f32 1.0, %v1816
    %v1818 = vmul.f32 %v1815, %v1817
    %v1819 = vadd.f32 %v1815, %v1818
    %vm1820 = vweird.f32 %v1813
    %vm1821 = vweird.f32 %v1815
    %vm1822 = vmor %vm1820, %vm1821
    %v1823 = vsel %vm1822, %v1815, %v1819
    %v1824 = vand.u32 2147483647, %v1813
    %vm1825 = vcmp.eq.f32.partialorder %v1824, 8.507059e+37
    %v1826 = vand.u32 %v1813, 2147483648
    %v1827 = vor.u32 1.1754944e-38, %v1826
    %v1828 = vsel %vm1825, %v1827, %v1823
    %v1829 = vmul.f32 1.0, %v1828
    %v1830 = vrcp.pop %v1814
    %v1831 = vmul.f32 %v1814, %v1830
    %v1832 = vsub.f32 1.0, %v1831
    %v1833 = vmul.f32 %v1830, %v1832
    %v1834 = vadd.f32 %v1830, %v1833
    %vm1835 = vweird.f32 %v1814
    %vm1836 = vweird.f32 %v1830
    %vm1837 = vmor %vm1835, %vm1836
    %v1838 = vsel %vm1837, %v1830, %v1834
    %v1839 = vand.u32 2147483647, %v1814
    %vm1840 = vcmp.eq.f32.partialorder %v1839, 8.507059e+37
    %v1841 = vand.u32 %v1814, 2147483648
    %v1842 = vor.u32 1.1754944e-38, %v1841
    %v1843 = vsel %vm1840, %v1842, %v1838
    %v1844 = vmul.f32 1.0, %v1843
    %v1845 = vtanh.pop %v1806
    %v1846 = vmul.f32 %v1829, %v1624
    %1848 = vrot.lane.b32.xlu0 %v1845, 64
    %v1849 = vpop.permute.xlu0 %1848
    %v1851 = vmul.f32 %v1829, %v1849
    %1853 = vrot.lane.b32.xlu0 %v1851, 64
    %v1854 = vpop.permute.xlu0 %1853
    %v1856 = vadd.f32 %v1846, %v1854
    %v1857 = vtanh.pop %v1856
    %1859 = vrot.lane.b32.xlu0 %v1857, 64
    %v1860 = vpop.permute.xlu0 %1859
    %v1862 = vmul.f32 %v1844, %v1860
    %v1864 = vsel %vm777, %v1862, 0
    %1866 = vmatpush.msra.mxu0 0.0
    %1867 = vmatpush.msra.mxu0 0.0
    %1868 = vmatpush.msra.mxu0 0.0
    %1869 = vmatpush.msra.mxu0 0.0
    %1870 = vmatpush.msra.mxu0 0.0
    %1871 = vmatpush.msra.mxu0 0.0
    %1872 = vmatpush.msra.mxu0 0.0
    %1873 = vmatpush.msra.mxu0 0.0
    %1874 = vmatpush.msra.mxu0 %v83
    %1875 = vmatpush.msra.mxu0 %v82
    %1876 = vmatpush.msra.mxu0 %v81
    %1877 = vmatpush.msra.mxu0 %v80
    %1878 = vmatpush.msra.mxu0 %v79
    %1879 = vmatpush.msra.mxu0 %v78
    %1880 = vmatpush.msra.mxu0 %v77
    %1881 = vmatpush.msra.mxu0 %v76
    %1882 = vmatmul.f32.gmra.mxu0 %v1864
    %v1883 = vpop.f32.mrf.mxu0
    %v1884 = vadd.f32 %v85, %v1883
    %1885 = vdwg.mxu0
    %v1887 = vrot.slane %v1884, 1
    %v1888 = vrot.slane %v1884, 2
    %v1889 = vrot.slane %v1884, 3
    %1893 = vst.msk [vmem:[%s6 + $0x4] sm:$0x1] %vm961, %v1884
    %1894 = vst.msk [vmem:[%s6 + $0xc] sm:$0x1] %vm961, %v1887
    %1895 = vst.msk [vmem:[%s6 + $0x14] sm:$0x1] %vm961, %v1888
    %1896 = vst.msk [vmem:[%s6 + $0x1c] sm:$0x1] %vm961, %v1889
    // Predicated region
    $region38: #{seq2seq_trace_forward.1} parent=1 // pred_check
      _
    $region39: #{seq2seq_trace_forward.1} parent=1 // pred_check_branch
      %1898 = sbr.rel (0) target = $region41
    $region40: #{seq2seq_trace_forward.1} parent=1 // pred_region
      _
    $region41: #{seq2seq_trace_forward.1} parent=1 // pred_fallthru
      _
    // Predicated region
    $region42: #{seq2seq_trace_forward.1} parent=1 // pred_check
      _
    $region43: #{seq2seq_trace_forward.1} parent=1 // pred_check_branch
      %1900 = sbr.rel (0) target = $region45
    $region44: #{seq2seq_trace_forward.1} parent=1 // pred_region
      _
    $region45: #{seq2seq_trace_forward.1} parent=1 // pred_fallthru
      _
    %1901 = vsyncpa [#allocation3], 1
    %1902 = vsyncpa [#allocation7], 1
    %1903 = vsyncpa [#allocation4], 1

</llo_original>
